<compile_context>
chip_gen: v5e
topology: v5e:2x2
jax: 0.10.0
libtpu: 0.0.40
codegen_flags: <defaults>
</compile_context>

<pallas_src>
import jax
import jax.numpy as jnp
from jax.experimental import pallas as pl
from jax.experimental.pallas import tpu as pltpu

EPS = 1e-5
LANE = 128


def down_kernel(col1_ref, w1_ref, g1_ref, bt1_ref, w2_ref, g2_ref, bt2_ref,
                o_ref, p1_ref):
    """Whole Down block, resident in VMEM for one grid step.

    col1_ref : (M, K1)                 conv1 im2col columns (wrapper-built), bf16
    w1_ref   : (K1, Cp_mid)            conv1 weights, bf16
    g1/bt1   : (1, Cp_mid)             BN1 gamma / beta, f32 (zero-padded chans)
    w2_ref   : (9, Cp_mid, Cp_out)     conv2 per-tap weights, bf16
    g2/bt2   : (1, Cp_out)             BN2 gamma / beta, f32
    o_ref    : (M, Cp_out)             lane-dense bf16 output (NHWC rows flat)
    p1_ref   : (N, Ho+2, Wo+2, Cp_mid) bf16 zero-framed scratch for conv2 halo
    """
    N, Hp, Wp, Cp_mid = p1_ref.shape
    Ho, Wo = Hp - 2, Wp - 2
    M = col1_ref.shape[0]
    inv_m = 1.0 / M

    def bn_relu(y, g_ref, bt_ref):
        # Training-mode BN over the batch (biased var), two-pass stats, folded
        # into one per-channel scale/shift + ReLU (single fused mul-add).
        mean = jnp.sum(y, axis=0, keepdims=True) * inv_m
        d = y - mean
        var = jnp.sum(d * d, axis=0, keepdims=True) * inv_m
        scale = g_ref[...] * jax.lax.rsqrt(var + EPS)
        shift = bt_ref[...] - mean * scale
        return jnp.maximum(y * scale + shift, 0.0)

    # ---- conv1: single MXU matmul (K = K1 = 128) -> BN -> ReLU ----
    y1 = jnp.dot(col1_ref[...], w1_ref[...],
                 preferred_element_type=jnp.float32)           # (M, Cp_mid) f32
    a1 = bn_relu(y1, g1_ref, bt1_ref)

    # ---- stage a1 into the zero-framed halo buffer (bf16) ----
    @pl.when(pl.program_id(0) == 0)
    def _():
        # Only the 1-pixel frame; the interior is overwritten every step and
        # the scratch persists across grid steps.
        zrow = jnp.zeros((N, 1, Wp, Cp_mid), jnp.bfloat16)
        zcol = jnp.zeros((N, Hp, 1, Cp_mid), jnp.bfloat16)
        p1_ref[:, 0:1, :, :] = zrow
        p1_ref[:, Hp - 1:Hp, :, :] = zrow
        p1_ref[:, :, 0:1, :] = zcol
        p1_ref[:, :, Wp - 1:Wp, :] = zcol

    p1_ref[:, 1:1 + Ho, 1:1 + Wo, :] = (
        a1.reshape(N, Ho, Wo, Cp_mid).astype(jnp.bfloat16))

    # ---- conv2: 9 per-tap matmuls accumulated in f32 (no im2col buffer) ----
    pv = p1_ref[...]                                           # (N, Hp, Wp, Cp_mid)
    acc = None
    for t in range(9):
        dy, dx = t // 3, t % 3
        tap = pv[:, dy:dy + Ho, dx:dx + Wo, :].reshape(M, Cp_mid)
        part = jnp.dot(tap, w2_ref[t], preferred_element_type=jnp.float32)
        acc = part if acc is None else acc + part
    a2 = bn_relu(acc, g2_ref, bt2_ref)                         # (M, Cp_out)

    o_ref[...] = a2.astype(o_ref.dtype)


def _round_up(x, m):
    return (x + m - 1) // m * m


def _full_spec(shape):
    nd = len(shape)
    return pl.BlockSpec(shape, lambda i, _nd=nd: (0,) * _nd)


def _nbytes(shape, dtype):
    n = 1
    for s in shape:
        n *= s
    return n * jnp.dtype(dtype).itemsize


@jax.jit
def down_forward(x_nchw, params):
    """Down.forward for an NCHW input, using the Pallas kernel above."""
    N, Cin, H, W = x_nchw.shape
    Ho, Wo = H // 2, W // 2
    M = N * Ho * Wo
    C1 = params["w1"].shape[0]
    C2 = params["w2"].shape[0]
    Cp_mid = _round_up(C1, LANE)
    Cp_out = _round_up(C2, LANE)
    K1 = _round_up(9 * Cin, LANE)

    # -- wrapper-side 2x2 max-pool (NCHW -> pooled NHWC) --
    x_nhwc = jnp.transpose(x_nchw, (0, 2, 3, 1)).astype(jnp.float32)
    pooled = x_nhwc.reshape(N, Ho, 2, Wo, 2, Cin).max(axis=(2, 4))  # (N,Ho,Wo,Cin)

    # -- conv1 im2col at the REAL channel count, padded once to K1 = 128, bf16 --
    xp = jnp.pad(pooled, ((0, 0), (1, 1), (1, 1), (0, 0)))
    taps = [xp[:, dy:dy + Ho, dx:dx + Wo, :]
            for dy in range(3) for dx in range(3)]
    col1 = jnp.concatenate(taps, axis=-1).reshape(M, 9 * Cin)
    col1 = jnp.pad(col1, ((0, 0), (0, K1 - 9 * Cin))).astype(jnp.bfloat16)

    # -- conv1 weights OIHW -> (9*Cin, C1), padded to (K1, Cp_mid), bf16 --
    w1t = jnp.transpose(params["w1"], (2, 3, 1, 0)).reshape(9 * Cin, C1)
    w1t = jnp.pad(w1t, ((0, K1 - 9 * Cin), (0, Cp_mid - C1))).astype(jnp.bfloat16)

    # -- conv2 weights OIHW -> (9, Cp_mid, Cp_out), bf16 (per-tap layout) --
    w2t = jnp.transpose(params["w2"], (2, 3, 1, 0))            # (3,3,C1,C2)
    w2t = jnp.pad(w2t, ((0, 0), (0, 0), (0, Cp_mid - C1), (0, Cp_out - C2)))
    w2t = w2t.reshape(9, Cp_mid, Cp_out).astype(jnp.bfloat16)

    def prep_vec(v, c, cp):
        return jnp.pad(v, (0, cp - c)).reshape(1, cp).astype(jnp.float32)

    g1 = prep_vec(params["g1"], C1, Cp_mid)
    bt1 = prep_vec(params["bt1"], C1, Cp_mid)
    g2 = prep_vec(params["g2"], C2, Cp_out)
    bt2 = prep_vec(params["bt2"], C2, Cp_out)
    # Conv biases b1/b2 intentionally NOT passed: cancelled exactly by the
    # training-mode BatchNorm mean subtraction.

    in_arrays = (col1, w1t, g1, bt1, w2t, g2, bt2)
    out_shape = (M, Cp_out)
    scratch_shape = (N, Ho + 2, Wo + 2, Cp_mid)

    # VMEM budget derived from actual buffers (double-buffered ins/outs +
    # scratch + headroom for f32 intermediates), capped for v7x's 64 MiB.
    vmem_bytes = (2 * sum(_nbytes(a.shape, a.dtype) for a in in_arrays)
                  + 2 * _nbytes(out_shape, jnp.bfloat16)
                  + _nbytes(scratch_shape, jnp.bfloat16)
                  + 4 * 1024 * 1024)
    vmem_bytes = int(min(64 * 1024 * 1024, max(8 * 1024 * 1024, vmem_bytes)))

    out_flat = pl.pallas_call(
        down_kernel,
        out_shape=jax.ShapeDtypeStruct(out_shape, jnp.bfloat16),
        grid=(1,),
        in_specs=[_full_spec(a.shape) for a in in_arrays],
        out_specs=_full_spec(out_shape),
        scratch_shapes=[pltpu.VMEM(scratch_shape, jnp.bfloat16)],
        compiler_params=pltpu.CompilerParams(
            dimension_semantics=("arbitrary",),
            vmem_limit_bytes=vmem_bytes),
    )(*in_arrays)

    out = out_flat.reshape(N, Ho, Wo, Cp_out)[..., :C2].astype(x_nchw.dtype)
    return jnp.transpose(out, (0, 3, 1, 2))                    # NCHW


def ref_forward(x, p):
    """Pure-JAX reference (NCHW, f32) mirroring the PyTorch module."""
    N, Cin, H, W = x.shape
    Ho, Wo = H // 2, W // 2
    xp = x.reshape(N, Cin, Ho, 2, Wo, 2).max(axis=(3, 5))

    def conv(y, w, b):
        out = jax.lax.conv_general_dilated(
            y, w, window_strides=(1, 1), padding="SAME",
            dimension_numbers=("NCHW", "OIHW", "NCHW"))
        return out + b[None, :, None, None]

    def bn_relu(y, g, bt):
        mean = y.mean(axis=(0, 2, 3), keepdims=True)
        var = ((y - mean) ** 2).mean(axis=(0, 2, 3), keepdims=True)
        yn = (y - mean) / jnp.sqrt(var + EPS)
        yn = yn * g[None, :, None, None] + bt[None, :, None, None]
        return jnp.maximum(yn, 0.0)

    y = bn_relu(conv(xp, p["w1"], p["b1"]), p["g1"], p["bt1"])
    y = bn_relu(conv(y, p["w2"], p["b2"]), p["g2"], p["bt2"])
    return y


def make_params(key, in_channels, out_channels):
    ks = jax.random.split(key, 8)
    c_in, c_out = in_channels, out_channels
    return {
        "w1": 0.1 * jax.random.normal(ks[0], (c_out, c_in, 3, 3), jnp.float32),
        "b1": 0.05 * jax.random.normal(ks[1], (c_out,), jnp.float32),
        "g1": 1.0 + 0.1 * jax.random.normal(ks[2], (c_out,), jnp.float32),
        "bt1": 0.05 * jax.random.normal(ks[3], (c_out,), jnp.float32),
        "w2": 0.1 * jax.random.normal(ks[4], (c_out, c_out, 3, 3), jnp.float32),
        "b2": 0.05 * jax.random.normal(ks[5], (c_out,), jnp.float32),
        "g2": 1.0 + 0.1 * jax.random.normal(ks[6], (c_out,), jnp.float32),
        "bt2": 0.05 * jax.random.normal(ks[7], (c_out,), jnp.float32),
    }


if __name__ == "__main__":
    key = jax.random.PRNGKey(0)
    kx, kp = jax.random.split(key)

    N, C_IN, H, W = 2, 4, 16, 16
    C_OUT = 8

    x = jax.random.normal(kx, (N, C_IN, H, W), jnp.float32)
    params = make_params(kp, C_IN, C_OUT)

    out = down_forward(x, params)
    out = jax.block_until_ready(out)

    ref = ref_forward(x, params)
    assert out.shape == ref.shape == (N, C_OUT, H // 2, W // 2), out.shape
    max_err = float(jnp.max(jnp.abs(out - ref)))
    # bf16 matmul operands / activations / output vs the f32 reference.
    if not jnp.allclose(out, ref, atol=7e-2, rtol=7e-2):
        raise AssertionError(f"mismatch vs reference, max abs err = {max_err}")

    print("KERNEL_OK")
</pallas_src>

<mosaic_0001>
module attributes {stable_mosaic.version = 11 : i64} {
  func.func @down_kernel(%arg0: i32, %arg1: memref<128x128xbf16, #tpu.memory_space<vmem>>, %arg2: memref<128x128xbf16, #tpu.memory_space<vmem>>, %arg3: memref<1x128xf32, #tpu.memory_space<vmem>>, %arg4: memref<1x128xf32, #tpu.memory_space<vmem>>, %arg5: memref<9x128x128xbf16, #tpu.memory_space<vmem>>, %arg6: memref<1x128xf32, #tpu.memory_space<vmem>>, %arg7: memref<1x128xf32, #tpu.memory_space<vmem>>, %arg8: memref<128x128xbf16, #tpu.memory_space<vmem>>, %arg9: memref<2x10x10x128xbf16, #tpu.memory_space<vmem>>) attributes {dimension_semantics = [#tpu.dimension_semantics<arbitrary>], iteration_bounds = array<i64: 1>, scalar_prefetch = 0 : i64, scratch_operands = 1 : i64, tpu.core_type = #tpu.core_type<tc>, window_params = [{pipeline_mode = #tpu.pipeline_mode<synchronous>, transform_indices = @transform_0, window_bounds = array<i64: 128, 128>}, {pipeline_mode = #tpu.pipeline_mode<synchronous>, transform_indices = @transform_1, window_bounds = array<i64: 128, 128>}, {pipeline_mode = #tpu.pipeline_mode<synchronous>, transform_indices = @transform_2, window_bounds = array<i64: 1, 128>}, {pipeline_mode = #tpu.pipeline_mode<synchronous>, transform_indices = @transform_3, window_bounds = array<i64: 1, 128>}, {pipeline_mode = #tpu.pipeline_mode<synchronous>, transform_indices = @transform_4, window_bounds = array<i64: 9, 128, 128>}, {pipeline_mode = #tpu.pipeline_mode<synchronous>, transform_indices = @transform_5, window_bounds = array<i64: 1, 128>}, {pipeline_mode = #tpu.pipeline_mode<synchronous>, transform_indices = @transform_6, window_bounds = array<i64: 1, 128>}, {pipeline_mode = #tpu.pipeline_mode<synchronous>, transform_indices = @transform_7, window_bounds = array<i64: 128, 128>}]} {
    %c0 = arith.constant 0 : index
    %c0_0 = arith.constant 0 : index
    %0 = vector.load %arg1[%c0, %c0_0] : memref<128x128xbf16, #tpu.memory_space<vmem>>, vector<128x128xbf16>
    %c0_1 = arith.constant 0 : index
    %c0_2 = arith.constant 0 : index
    %1 = vector.load %arg2[%c0_1, %c0_2] : memref<128x128xbf16, #tpu.memory_space<vmem>>, vector<128x128xbf16>
    %cst = arith.constant dense<0.000000e+00> : vector<128x128xf32>
    %2 = tpu.matmul %0, %1, %cst {dimension_numbers = #tpu.dot_dimension_numbers<[1], [0], [0], [1], [0, 0, 1, 1], [], []>} : vector<128x128xbf16>, vector<128x128xbf16>, vector<128x128xf32> -> vector<128x128xf32>
    %cst_3 = arith.constant dense<0.000000e+00> : vector<128xf32>
    %3 = vector.multi_reduction <add>, %2, %cst_3 [0] : vector<128x128xf32> to vector<128xf32>
    %4 = vector.shape_cast %3 : vector<128xf32> to vector<1x128xf32>
    %cst_4 = arith.constant 7.812500e-03 : f32
    %5 = vector.broadcast %cst_4 : f32 to vector<1x128xf32>
    %6 = arith.mulf %4, %5 : vector<1x128xf32>
    %7 = vector.broadcast %6 : vector<1x128xf32> to vector<128x128xf32>
    %8 = arith.subf %2, %7 : vector<128x128xf32>
    %9 = arith.mulf %8, %8 : vector<128x128xf32>
    %cst_5 = arith.constant dense<0.000000e+00> : vector<128xf32>
    %10 = vector.multi_reduction <add>, %9, %cst_5 [0] : vector<128x128xf32> to vector<128xf32>
    %11 = vector.shape_cast %10 : vector<128xf32> to vector<1x128xf32>
    %cst_6 = arith.constant 7.812500e-03 : f32
    %12 = vector.broadcast %cst_6 : f32 to vector<1x128xf32>
    %13 = arith.mulf %11, %12 : vector<1x128xf32>
    %c0_7 = arith.constant 0 : index
    %c0_8 = arith.constant 0 : index
    %14 = vector.load %arg3[%c0_7, %c0_8] : memref<1x128xf32, #tpu.memory_space<vmem>>, vector<1x128xf32>
    %cst_9 = arith.constant 9.99999974E-6 : f32
    %15 = vector.broadcast %cst_9 : f32 to vector<1x128xf32>
    %16 = arith.addf %13, %15 : vector<1x128xf32>
    %17 = math.rsqrt %16 : vector<1x128xf32>
    %18 = arith.mulf %14, %17 : vector<1x128xf32>
    %c0_10 = arith.constant 0 : index
    %c0_11 = arith.constant 0 : index
    %19 = vector.load %arg4[%c0_10, %c0_11] : memref<1x128xf32, #tpu.memory_space<vmem>>, vector<1x128xf32>
    %20 = arith.mulf %6, %18 : vector<1x128xf32>
    %21 = arith.subf %19, %20 : vector<1x128xf32>
    %22 = vector.broadcast %18 : vector<1x128xf32> to vector<128x128xf32>
    %23 = arith.mulf %2, %22 : vector<128x128xf32>
    %24 = vector.broadcast %21 : vector<1x128xf32> to vector<128x128xf32>
    %25 = arith.addf %23, %24 : vector<128x128xf32>
    %cst_12 = arith.constant 0.000000e+00 : f32
    %26 = vector.broadcast %cst_12 : f32 to vector<128x128xf32>
    %27 = arith.maximumf %25, %26 : vector<128x128xf32>
    %c0_i32 = arith.constant 0 : i32
    %28 = arith.cmpi eq, %arg0, %c0_i32 : i32
    %29 = arith.extui %28 : i1 to i32
    %c0_i32_13 = arith.constant 0 : i32
    %30 = arith.cmpi ne, %29, %c0_i32_13 : i32
    scf.if %30 {
      %cst_62 = arith.constant 0.000000e+00 : bf16
      %115 = vector.broadcast %cst_62 : bf16 to vector<2x1x10x128xbf16>
      %cst_63 = arith.constant 0.000000e+00 : bf16
      %116 = vector.broadcast %cst_63 : bf16 to vector<2x10x1x128xbf16>
      %c0_64 = arith.constant 0 : index
      %c0_65 = arith.constant 0 : index
      %c0_66 = arith.constant 0 : index
      %c0_67 = arith.constant 0 : index
      %117 = vector.load %arg9[%c0_64, %c0_65, %c0_66, %c0_67] : memref<2x10x10x128xbf16, #tpu.memory_space<vmem>>, vector<2x1x10x128xbf16>
      tpu.vector_store %arg9[%c0_64, %c0_65, %c0_66, %c0_67], %115 {strides = array<i32>} : memref<2x10x10x128xbf16, #tpu.memory_space<vmem>>, vector<2x1x10x128xbf16>,
      %c0_68 = arith.constant 0 : index
      %c9 = arith.constant 9 : index
      %c0_69 = arith.constant 0 : index
      %c0_70 = arith.constant 0 : index
      %118 = vector.load %arg9[%c0_68, %c9, %c0_69, %c0_70] : memref<2x10x10x128xbf16, #tpu.memory_space<vmem>>, vector<2x1x10x128xbf16>
      tpu.vector_store %arg9[%c0_68, %c9, %c0_69, %c0_70], %115 {strides = array<i32>} : memref<2x10x10x128xbf16, #tpu.memory_space<vmem>>, vector<2x1x10x128xbf16>,
      %c0_71 = arith.constant 0 : index
      %c0_72 = arith.constant 0 : index
      %c0_73 = arith.constant 0 : index
      %c0_74 = arith.constant 0 : index
      %119 = vector.load %arg9[%c0_71, %c0_72, %c0_73, %c0_74] : memref<2x10x10x128xbf16, #tpu.memory_space<vmem>>, vector<2x10x1x128xbf16>
      tpu.vector_store %arg9[%c0_71, %c0_72, %c0_73, %c0_74], %116 {strides = array<i32>} : memref<2x10x10x128xbf16, #tpu.memory_space<vmem>>, vector<2x10x1x128xbf16>,
      %c0_75 = arith.constant 0 : index
      %c0_76 = arith.constant 0 : index
      %c9_77 = arith.constant 9 : index
      %c0_78 = arith.constant 0 : index
      %120 = vector.load %arg9[%c0_75, %c0_76, %c9_77, %c0_78] : memref<2x10x10x128xbf16, #tpu.memory_space<vmem>>, vector<2x10x1x128xbf16>
      tpu.vector_store %arg9[%c0_75, %c0_76, %c9_77, %c0_78], %116 {strides = array<i32>} : memref<2x10x10x128xbf16, #tpu.memory_space<vmem>>, vector<2x10x1x128xbf16>,
    } else {
    }
    %31 = vector.shape_cast %27 : vector<128x128xf32> to vector<2x8x8x128xf32>
    %32 = arith.truncf %31 : vector<2x8x8x128xf32> to vector<2x8x8x128xbf16>
    %c0_14 = arith.constant 0 : index
    %c1 = arith.constant 1 : index
    %c1_15 = arith.constant 1 : index
    %c0_16 = arith.constant 0 : index
    %33 = vector.load %arg9[%c0_14, %c1, %c1_15, %c0_16] : memref<2x10x10x128xbf16, #tpu.memory_space<vmem>>, vector<2x8x8x128xbf16>
    tpu.vector_store %arg9[%c0_14, %c1, %c1_15, %c0_16], %32 {strides = array<i32>} : memref<2x10x10x128xbf16, #tpu.memory_space<vmem>>, vector<2x8x8x128xbf16>,
    %c0_17 = arith.constant 0 : index
    %c0_18 = arith.constant 0 : index
    %c0_19 = arith.constant 0 : index
    %c0_20 = arith.constant 0 : index
    %34 = vector.load %arg9[%c0_17, %c0_18, %c0_19, %c0_20] : memref<2x10x10x128xbf16, #tpu.memory_space<vmem>>, vector<2x10x10x128xbf16>
    %35 = vector.extract_strided_slice %34 {offsets = [0, 0, 0, 0], sizes = [2, 8, 8, 128], strides = [1, 1, 1, 1]} : vector<2x10x10x128xbf16> to vector<2x8x8x128xbf16>
    %36 = vector.shape_cast %35 : vector<2x8x8x128xbf16> to vector<128x128xbf16>
    %c0_21 = arith.constant 0 : index
    %c0_22 = arith.constant 0 : index
    %c0_23 = arith.constant 0 : index
    %37 = vector.load %arg5[%c0_21, %c0_22, %c0_23] : memref<9x128x128xbf16, #tpu.memory_space<vmem>>, vector<1x128x128xbf16>
    %38 = vector.shape_cast %37 : vector<1x128x128xbf16> to vector<128x128xbf16>
    %cst_24 = arith.constant dense<0.000000e+00> : vector<128x128xf32>
    %39 = tpu.matmul %36, %38, %cst_24 {dimension_numbers = #tpu.dot_dimension_numbers<[1], [0], [0], [1], [0, 0, 1, 1], [], []>} : vector<128x128xbf16>, vector<128x128xbf16>, vector<128x128xf32> -> vector<128x128xf32>
    %40 = vector.extract_strided_slice %34 {offsets = [0, 0, 1, 0], sizes = [2, 8, 8, 128], strides = [1, 1, 1, 1]} : vector<2x10x10x128xbf16> to vector<2x8x8x128xbf16>
    %41 = vector.shape_cast %40 : vector<2x8x8x128xbf16> to vector<128x128xbf16>
    %c1_25 = arith.constant 1 : index
    %c0_26 = arith.constant 0 : index
    %c0_27 = arith.constant 0 : index
    %42 = vector.load %arg5[%c1_25, %c0_26, %c0_27] : memref<9x128x128xbf16, #tpu.memory_space<vmem>>, vector<1x128x128xbf16>
    %43 = vector.shape_cast %42 : vector<1x128x128xbf16> to vector<128x128xbf16>
    %cst_28 = arith.constant dense<0.000000e+00> : vector<128x128xf32>
    %44 = tpu.matmul %41, %43, %cst_28 {dimension_numbers = #tpu.dot_dimension_numbers<[1], [0], [0], [1], [0, 0, 1, 1], [], []>} : vector<128x128xbf16>, vector<128x128xbf16>, vector<128x128xf32> -> vector<128x128xf32>
    %45 = arith.addf %39, %44 : vector<128x128xf32>
    %46 = vector.extract_strided_slice %34 {offsets = [0, 0, 2, 0], sizes = [2, 8, 8, 128], strides = [1, 1, 1, 1]} : vector<2x10x10x128xbf16> to vector<2x8x8x128xbf16>
    %47 = vector.shape_cast %46 : vector<2x8x8x128xbf16> to vector<128x128xbf16>
    %c2 = arith.constant 2 : index
    %c0_29 = arith.constant 0 : index
    %c0_30 = arith.constant 0 : index
    %48 = vector.load %arg5[%c2, %c0_29, %c0_30] : memref<9x128x128xbf16, #tpu.memory_space<vmem>>, vector<1x128x128xbf16>
    %49 = vector.shape_cast %48 : vector<1x128x128xbf16> to vector<128x128xbf16>
    %cst_31 = arith.constant dense<0.000000e+00> : vector<128x128xf32>
    %50 = tpu.matmul %47, %49, %cst_31 {dimension_numbers = #tpu.dot_dimension_numbers<[1], [0], [0], [1], [0, 0, 1, 1], [], []>} : vector<128x128xbf16>, vector<128x128xbf16>, vector<128x128xf32> -> vector<128x128xf32>
    %51 = arith.addf %45, %50 : vector<128x128xf32>
    %52 = vector.extract_strided_slice %34 {offsets = [0, 1, 0, 0], sizes = [2, 8, 8, 128], strides = [1, 1, 1, 1]} : vector<2x10x10x128xbf16> to vector<2x8x8x128xbf16>
    %53 = vector.shape_cast %52 : vector<2x8x8x128xbf16> to vector<128x128xbf16>
    %c3 = arith.constant 3 : index
    %c0_32 = arith.constant 0 : index
    %c0_33 = arith.constant 0 : index
    %54 = vector.load %arg5[%c3, %c0_32, %c0_33] : memref<9x128x128xbf16, #tpu.memory_space<vmem>>, vector<1x128x128xbf16>
    %55 = vector.shape_cast %54 : vector<1x128x128xbf16> to vector<128x128xbf16>
    %cst_34 = arith.constant dense<0.000000e+00> : vector<128x128xf32>
    %56 = tpu.matmul %53, %55, %cst_34 {dimension_numbers = #tpu.dot_dimension_numbers<[1], [0], [0], [1], [0, 0, 1, 1], [], []>} : vector<128x128xbf16>, vector<128x128xbf16>, vector<128x128xf32> -> vector<128x128xf32>
    %57 = arith.addf %51, %56 : vector<128x128xf32>
    %58 = vector.extract_strided_slice %34 {offsets = [0, 1, 1, 0], sizes = [2, 8, 8, 128], strides = [1, 1, 1, 1]} : vector<2x10x10x128xbf16> to vector<2x8x8x128xbf16>
    %59 = vector.shape_cast %58 : vector<2x8x8x128xbf16> to vector<128x128xbf16>
    %c4 = arith.constant 4 : index
    %c0_35 = arith.constant 0 : index
    %c0_36 = arith.constant 0 : index
    %60 = vector.load %arg5[%c4, %c0_35, %c0_36] : memref<9x128x128xbf16, #tpu.memory_space<vmem>>, vector<1x128x128xbf16>
    %61 = vector.shape_cast %60 : vector<1x128x128xbf16> to vector<128x128xbf16>
    %cst_37 = arith.constant dense<0.000000e+00> : vector<128x128xf32>
    %62 = tpu.matmul %59, %61, %cst_37 {dimension_numbers = #tpu.dot_dimension_numbers<[1], [0], [0], [1], [0, 0, 1, 1], [], []>} : vector<128x128xbf16>, vector<128x128xbf16>, vector<128x128xf32> -> vector<128x128xf32>
    %63 = arith.addf %57, %62 : vector<128x128xf32>
    %64 = vector.extract_strided_slice %34 {offsets = [0, 1, 2, 0], sizes = [2, 8, 8, 128], strides = [1, 1, 1, 1]} : vector<2x10x10x128xbf16> to vector<2x8x8x128xbf16>
    %65 = vector.shape_cast %64 : vector<2x8x8x128xbf16> to vector<128x128xbf16>
    %c5 = arith.constant 5 : index
    %c0_38 = arith.constant 0 : index
    %c0_39 = arith.constant 0 : index
    %66 = vector.load %arg5[%c5, %c0_38, %c0_39] : memref<9x128x128xbf16, #tpu.memory_space<vmem>>, vector<1x128x128xbf16>
    %67 = vector.shape_cast %66 : vector<1x128x128xbf16> to vector<128x128xbf16>
    %cst_40 = arith.constant dense<0.000000e+00> : vector<128x128xf32>
    %68 = tpu.matmul %65, %67, %cst_40 {dimension_numbers = #tpu.dot_dimension_numbers<[1], [0], [0], [1], [0, 0, 1, 1], [], []>} : vector<128x128xbf16>, vector<128x128xbf16>, vector<128x128xf32> -> vector<128x128xf32>
    %69 = arith.addf %63, %68 : vector<128x128xf32>
    %70 = vector.extract_strided_slice %34 {offsets = [0, 2, 0, 0], sizes = [2, 8, 8, 128], strides = [1, 1, 1, 1]} : vector<2x10x10x128xbf16> to vector<2x8x8x128xbf16>
    %71 = vector.shape_cast %70 : vector<2x8x8x128xbf16> to vector<128x128xbf16>
    %c6 = arith.constant 6 : index
    %c0_41 = arith.constant 0 : index
    %c0_42 = arith.constant 0 : index
    %72 = vector.load %arg5[%c6, %c0_41, %c0_42] : memref<9x128x128xbf16, #tpu.memory_space<vmem>>, vector<1x128x128xbf16>
    %73 = vector.shape_cast %72 : vector<1x128x128xbf16> to vector<128x128xbf16>
    %cst_43 = arith.constant dense<0.000000e+00> : vector<128x128xf32>
    %74 = tpu.matmul %71, %73, %cst_43 {dimension_numbers = #tpu.dot_dimension_numbers<[1], [0], [0], [1], [0, 0, 1, 1], [], []>} : vector<128x128xbf16>, vector<128x128xbf16>, vector<128x128xf32> -> vector<128x128xf32>
    %75 = arith.addf %69, %74 : vector<128x128xf32>
    %76 = vector.extract_strided_slice %34 {offsets = [0, 2, 1, 0], sizes = [2, 8, 8, 128], strides = [1, 1, 1, 1]} : vector<2x10x10x128xbf16> to vector<2x8x8x128xbf16>
    %77 = vector.shape_cast %76 : vector<2x8x8x128xbf16> to vector<128x128xbf16>
    %c7 = arith.constant 7 : index
    %c0_44 = arith.constant 0 : index
    %c0_45 = arith.constant 0 : index
    %78 = vector.load %arg5[%c7, %c0_44, %c0_45] : memref<9x128x128xbf16, #tpu.memory_space<vmem>>, vector<1x128x128xbf16>
    %79 = vector.shape_cast %78 : vector<1x128x128xbf16> to vector<128x128xbf16>
    %cst_46 = arith.constant dense<0.000000e+00> : vector<128x128xf32>
    %80 = tpu.matmul %77, %79, %cst_46 {dimension_numbers = #tpu.dot_dimension_numbers<[1], [0], [0], [1], [0, 0, 1, 1], [], []>} : vector<128x128xbf16>, vector<128x128xbf16>, vector<128x128xf32> -> vector<128x128xf32>
    %81 = arith.addf %75, %80 : vector<128x128xf32>
    %82 = vector.extract_strided_slice %34 {offsets = [0, 2, 2, 0], sizes = [2, 8, 8, 128], strides = [1, 1, 1, 1]} : vector<2x10x10x128xbf16> to vector<2x8x8x128xbf16>
    %83 = vector.shape_cast %82 : vector<2x8x8x128xbf16> to vector<128x128xbf16>
    %c8 = arith.constant 8 : index
    %c0_47 = arith.constant 0 : index
    %c0_48 = arith.constant 0 : index
    %84 = vector.load %arg5[%c8, %c0_47, %c0_48] : memref<9x128x128xbf16, #tpu.memory_space<vmem>>, vector<1x128x128xbf16>
    %85 = vector.shape_cast %84 : vector<1x128x128xbf16> to vector<128x128xbf16>
    %cst_49 = arith.constant dense<0.000000e+00> : vector<128x128xf32>
    %86 = tpu.matmul %83, %85, %cst_49 {dimension_numbers = #tpu.dot_dimension_numbers<[1], [0], [0], [1], [0, 0, 1, 1], [], []>} : vector<128x128xbf16>, vector<128x128xbf16>, vector<128x128xf32> -> vector<128x128xf32>
    %87 = arith.addf %81, %86 : vector<128x128xf32>
    %cst_50 = arith.constant dense<0.000000e+00> : vector<128xf32>
    %88 = vector.multi_reduction <add>, %87, %cst_50 [0] : vector<128x128xf32> to vector<128xf32>
    %89 = vector.shape_cast %88 : vector<128xf32> to vector<1x128xf32>
    %cst_51 = arith.constant 7.812500e-03 : f32
    %90 = vector.broadcast %cst_51 : f32 to vector<1x128xf32>
    %91 = arith.mulf %89, %90 : vector<1x128xf32>
    %92 = vector.broadcast %91 : vector<1x128xf32> to vector<128x128xf32>
    %93 = arith.subf %87, %92 : vector<128x128xf32>
    %94 = arith.mulf %93, %93 : vector<128x128xf32>
    %cst_52 = arith.constant dense<0.000000e+00> : vector<128xf32>
    %95 = vector.multi_reduction <add>, %94, %cst_52 [0] : vector<128x128xf32> to vector<128xf32>
    %96 = vector.shape_cast %95 : vector<128xf32> to vector<1x128xf32>
    %cst_53 = arith.constant 7.812500e-03 : f32
    %97 = vector.broadcast %cst_53 : f32 to vector<1x128xf32>
    %98 = arith.mulf %96, %97 : vector<1x128xf32>
    %c0_54 = arith.constant 0 : index
    %c0_55 = arith.constant 0 : index
    %99 = vector.load %arg6[%c0_54, %c0_55] : memref<1x128xf32, #tpu.memory_space<vmem>>, vector<1x128xf32>
    %cst_56 = arith.constant 9.99999974E-6 : f32
    %100 = vector.broadcast %cst_56 : f32 to vector<1x128xf32>
    %101 = arith.addf %98, %100 : vector<1x128xf32>
    %102 = math.rsqrt %101 : vector<1x128xf32>
    %103 = arith.mulf %99, %102 : vector<1x128xf32>
    %c0_57 = arith.constant 0 : index
    %c0_58 = arith.constant 0 : index
    %104 = vector.load %arg7[%c0_57, %c0_58] : memref<1x128xf32, #tpu.memory_space<vmem>>, vector<1x128xf32>
    %105 = arith.mulf %91, %103 : vector<1x128xf32>
    %106 = arith.subf %104, %105 : vector<1x128xf32>
    %107 = vector.broadcast %103 : vector<1x128xf32> to vector<128x128xf32>
    %108 = arith.mulf %87, %107 : vector<128x128xf32>
    %109 = vector.broadcast %106 : vector<1x128xf32> to vector<128x128xf32>
    %110 = arith.addf %108, %109 : vector<128x128xf32>
    %cst_59 = arith.constant 0.000000e+00 : f32
    %111 = vector.broadcast %cst_59 : f32 to vector<128x128xf32>
    %112 = arith.maximumf %110, %111 : vector<128x128xf32>
    %113 = arith.truncf %112 : vector<128x128xf32> to vector<128x128xbf16>
    %c0_60 = arith.constant 0 : index
    %c0_61 = arith.constant 0 : index
    %114 = vector.load %arg8[%c0_60, %c0_61] : memref<128x128xbf16, #tpu.memory_space<vmem>>, vector<128x128xbf16>
    tpu.vector_store %arg8[%c0_60, %c0_61], %113 {strides = array<i32>} : memref<128x128xbf16, #tpu.memory_space<vmem>>, vector<128x128xbf16>,
    return
  }
  func.func @transform_0(%arg0: i32) -> (i32, i32) {
    %c0_i32 = arith.constant 0 : i32
    %c0_i32_0 = arith.constant 0 : i32
    %c0_i32_1 = arith.constant 0 : i32
    return %c0_i32, %c0_i32_0 : i32, i32
  }
  func.func @transform_1(%arg0: i32) -> (i32, i32) {
    %c0_i32 = arith.constant 0 : i32
    %c0_i32_0 = arith.constant 0 : i32
    %c0_i32_1 = arith.constant 0 : i32
    return %c0_i32, %c0_i32_0 : i32, i32
  }
  func.func @transform_2(%arg0: i32) -> (i32, i32) {
    %c0_i32 = arith.constant 0 : i32
    %c0_i32_0 = arith.constant 0 : i32
    %c0_i32_1 = arith.constant 0 : i32
    return %c0_i32, %c0_i32_0 : i32, i32
  }
  func.func @transform_3(%arg0: i32) -> (i32, i32) {
    %c0_i32 = arith.constant 0 : i32
    %c0_i32_0 = arith.constant 0 : i32
    %c0_i32_1 = arith.constant 0 : i32
    return %c0_i32, %c0_i32_0 : i32, i32
  }
  func.func @transform_4(%arg0: i32) -> (i32, i32, i32) {
    %c0_i32 = arith.constant 0 : i32
    %c0_i32_0 = arith.constant 0 : i32
    %c0_i32_1 = arith.constant 0 : i32
    %c0_i32_2 = arith.constant 0 : i32
    return %c0_i32, %c0_i32_0, %c0_i32_1 : i32, i32, i32
  }
  func.func @transform_5(%arg0: i32) -> (i32, i32) {
    %c0_i32 = arith.constant 0 : i32
    %c0_i32_0 = arith.constant 0 : i32
    %c0_i32_1 = arith.constant 0 : i32
    return %c0_i32, %c0_i32_0 : i32, i32
  }
  func.func @transform_6(%arg0: i32) -> (i32, i32) {
    %c0_i32 = arith.constant 0 : i32
    %c0_i32_0 = arith.constant 0 : i32
    %c0_i32_1 = arith.constant 0 : i32
    return %c0_i32, %c0_i32_0 : i32, i32
  }
  func.func @transform_7(%arg0: i32) -> (i32, i32) {
    %c0_i32 = arith.constant 0 : i32
    %c0_i32_0 = arith.constant 0 : i32
    %c0_i32_1 = arith.constant 0 : i32
    return %c0_i32, %c0_i32_0 : i32, i32
  }
}

</mosaic_0001>

<llo_original>
// kernel: down_forward.1
$region0: #{down_forward.1}
  #allocation0 [shape = 'u32[]', space=smem, size = 0x4, offset = 0x4, fixed_abs, tag = 'smem constant byte address 0x4 - core index']
  #allocation1 [shape = 'u32[72,128]{1,0:T(1,128)}', space=vmem, size = 0x9000, scoped, tag = 'internal scratch']
  #allocation2 [shape = 'bf16[2,10,10,128]{3,2,1,0:T(8,128)(2,1)}', space=vmem, size = 0x14000, scoped, tag = 'scratch operand']
  %s0 = inlined_call_operand.vmem [shape: bf16[128,128], index: 0, kind: input, shape index: {}]
  %s1 = inlined_call_operand.vmem [shape: bf16[128,128], index: 1, kind: input, shape index: {}]
  %s2 = inlined_call_operand.vmem [shape: f32[1,128], index: 2, kind: input, shape index: {}]
  %s3 = inlined_call_operand.vmem [shape: f32[1,128], index: 3, kind: input, shape index: {}]
  %s4 = inlined_call_operand.vmem [shape: bf16[9,128,128], index: 4, kind: input, shape index: {}]
  %s5 = inlined_call_operand.vmem [shape: f32[1,128], index: 5, kind: input, shape index: {}]
  %s6 = inlined_call_operand.vmem [shape: f32[1,128], index: 6, kind: input, shape index: {}]
  %s7 = inlined_call_operand.vmem [shape: bf16[128,128], index: 7, kind: output, shape index: {}]
  %s8 = sld [smem:[#allocation0]]
  $region42: #{down_forward.1} parent=0
    _
  %s10 = ssub.s32 1, %s8
  %s11 = scalar_select 0, %s10, %s8
  // Predicated region
  $region2: #{down_forward.1} parent=0 // pred_check
    _
  $region3: #{down_forward.1} parent=0 // pred_check_branch
    %13 = sbr.rel (0) target = $region5
  $region4: #{down_forward.1} parent=0 // pred_region
    _
  $region5: #{down_forward.1} parent=0 // pred_fallthru
    _
  // Predicated region
  $region6: #{down_forward.1} parent=0 // pred_check
    _
  $region7: #{down_forward.1} parent=0 // pred_check_branch
    %15 = sbr.rel (0) target = $region9
  $region8: #{down_forward.1} parent=0 // pred_region
    _
  $region9: #{down_forward.1} parent=0 // pred_fallthru
    _
  // Predicated region
  $region10: #{down_forward.1} parent=0 // pred_check
    _
  $region11: #{down_forward.1} parent=0 // pred_check_branch
    %17 = sbr.rel (0) target = $region13
  $region12: #{down_forward.1} parent=0 // pred_region
    _
  $region13: #{down_forward.1} parent=0 // pred_fallthru
    _
  // Predicated region
  $region14: #{down_forward.1} parent=0 // pred_check
    _
  $region15: #{down_forward.1} parent=0 // pred_check_branch
    %19 = sbr.rel (0) target = $region17
  $region16: #{down_forward.1} parent=0 // pred_region
    _
  $region17: #{down_forward.1} parent=0 // pred_fallthru
    _
  // Predicated region
  $region18: #{down_forward.1} parent=0 // pred_check
    _
  $region19: #{down_forward.1} parent=0 // pred_check_branch
    %21 = sbr.rel (0) target = $region21
  $region20: #{down_forward.1} parent=0 // pred_region
    _
  $region21: #{down_forward.1} parent=0 // pred_fallthru
    _
  // Predicated region
  $region22: #{down_forward.1} parent=0 // pred_check
    _
  $region23: #{down_forward.1} parent=0 // pred_check_branch
    %23 = sbr.rel (0) target = $region25
  $region24: #{down_forward.1} parent=0 // pred_region
    _
  $region25: #{down_forward.1} parent=0 // pred_fallthru
    _
  // Predicated region
  $region26: #{down_forward.1} parent=0 // pred_check
    _
  $region27: #{down_forward.1} parent=0 // pred_check_branch
    %25 = sbr.rel (0) target = $region29
  $region28: #{down_forward.1} parent=0 // pred_region
    _
  $region29: #{down_forward.1} parent=0 // pred_fallthru
    _
  %v27 = vld [vmem:[%s0] sm:$0xf]
  %v28 = vld [vmem:[%s0 + $0x4] sm:$0xf]
  %v29 = vld [vmem:[%s0 + $0x8] sm:$0xf]
  %v30 = vld [vmem:[%s0 + $0xc] sm:$0xf]
  %v31 = vld [vmem:[%s0 + $0x10] sm:$0xf]
  %v32 = vld [vmem:[%s0 + $0x14] sm:$0xf]
  %v33 = vld [vmem:[%s0 + $0x18] sm:$0xf]
  %v34 = vld [vmem:[%s0 + $0x1c] sm:$0xf]
  %v35 = vld [vmem:[%s0 + $0x20] sm:$0xf]
  %v36 = vld [vmem:[%s0 + $0x24] sm:$0xf]
  %v37 = vld [vmem:[%s0 + $0x28] sm:$0xf]
  %v38 = vld [vmem:[%s0 + $0x2c] sm:$0xf]
  %v39 = vld [vmem:[%s0 + $0x30] sm:$0xf]
  %v40 = vld [vmem:[%s0 + $0x34] sm:$0xf]
  %v41 = vld [vmem:[%s0 + $0x38] sm:$0xf]
  %v42 = vld [vmem:[%s0 + $0x3c] sm:$0xf]
  %v43 = vld [vmem:[%s1] sm:$0xf]
  %v44 = vld [vmem:[%s1 + $0x4] sm:$0xf]
  %v45 = vld [vmem:[%s1 + $0x8] sm:$0xf]
  %v46 = vld [vmem:[%s1 + $0xc] sm:$0xf]
  %v47 = vld [vmem:[%s1 + $0x10] sm:$0xf]
  %v48 = vld [vmem:[%s1 + $0x14] sm:$0xf]
  %v49 = vld [vmem:[%s1 + $0x18] sm:$0xf]
  %v50 = vld [vmem:[%s1 + $0x1c] sm:$0xf]
  %v51 = vld [vmem:[%s1 + $0x20] sm:$0xf]
  %v52 = vld [vmem:[%s1 + $0x24] sm:$0xf]
  %v53 = vld [vmem:[%s1 + $0x28] sm:$0xf]
  %v54 = vld [vmem:[%s1 + $0x2c] sm:$0xf]
  %v55 = vld [vmem:[%s1 + $0x30] sm:$0xf]
  %v56 = vld [vmem:[%s1 + $0x34] sm:$0xf]
  %v57 = vld [vmem:[%s1 + $0x38] sm:$0xf]
  %v58 = vld [vmem:[%s1 + $0x3c] sm:$0xf]
  %v75 = vunpack.c.l.b16 %v27
  %v76 = vunpack.c.l.b16 %v28
  %v77 = vunpack.c.l.b16 %v29
  %v78 = vunpack.c.l.b16 %v30
  %v79 = vunpack.c.l.b16 %v31
  %v80 = vunpack.c.l.b16 %v32
  %v81 = vunpack.c.l.b16 %v33
  %v82 = vunpack.c.l.b16 %v34
  %v83 = vunpack.c.l.b16 %v35
  %v84 = vunpack.c.l.b16 %v36
  %v85 = vunpack.c.l.b16 %v37
  %v86 = vunpack.c.l.b16 %v38
  %v87 = vunpack.c.l.b16 %v39
  %v88 = vunpack.c.l.b16 %v40
  %v89 = vunpack.c.l.b16 %v41
  %v90 = vunpack.c.l.b16 %v42
  %v91 = vpack.c.b16 %v76, %v75
  %v92 = vpack.c.b16 %v78, %v77
  %v93 = vpack.c.b16 %v80, %v79
  %v94 = vpack.c.b16 %v82, %v81
  %v95 = vpack.c.b16 %v84, %v83
  %v96 = vpack.c.b16 %v86, %v85
  %v97 = vpack.c.b16 %v88, %v87
  %v98 = vpack.c.b16 %v90, %v89
  %v123 = vunpack.c.l.b16 %v43
  %v124 = vunpack.c.l.b16 %v44
  %v125 = vunpack.c.l.b16 %v45
  %v126 = vunpack.c.l.b16 %v46
  %v127 = vunpack.c.l.b16 %v47
  %v128 = vunpack.c.l.b16 %v48
  %v129 = vunpack.c.l.b16 %v49
  %v130 = vunpack.c.l.b16 %v50
  %v131 = vunpack.c.l.b16 %v51
  %v132 = vunpack.c.l.b16 %v52
  %v133 = vunpack.c.l.b16 %v53
  %v134 = vunpack.c.l.b16 %v54
  %v135 = vunpack.c.l.b16 %v55
  %v136 = vunpack.c.l.b16 %v56
  %v137 = vunpack.c.l.b16 %v57
  %v138 = vunpack.c.l.b16 %v58
  %v139 = vpack.c.b16 %v124, %v123
  %v140 = vpack.c.b16 %v126, %v125
  %v141 = vpack.c.b16 %v128, %v127
  %v142 = vpack.c.b16 %v130, %v129
  %v143 = vpack.c.b16 %v132, %v131
  %v144 = vpack.c.b16 %v134, %v133
  %v145 = vpack.c.b16 %v136, %v135
  %v146 = vpack.c.b16 %v138, %v137
  %155 = vmatpush.bf16.msra.mxu0 %v146
  %156 = vmatpush.bf16.msra.mxu0 %v145
  %157 = vmatpush.bf16.msra.mxu0 %v144
  %158 = vmatpush.bf16.msra.mxu0 %v143
  %159 = vmatpush.bf16.msra.mxu0 %v142
  %160 = vmatpush.bf16.msra.mxu0 %v141
  %161 = vmatpush.bf16.msra.mxu0 %v140
  %162 = vmatpush.bf16.msra.mxu0 %v139
  %163 = vmatmul.bf16.gmra.mxu0 %v91
  %v164 = vpop.f32.mrf.mxu0
  %v165 = vadd.f32 0.0, %v164
  %v166 = vpop.f32.mrf.mxu0
  %v167 = vadd.f32 0.0, %v166
  %168 = vmatmul.bf16.gmra.mxu0 %v92
  %v169 = vpop.f32.mrf.mxu0
  %v170 = vadd.f32 0.0, %v169
  %v171 = vpop.f32.mrf.mxu0
  %v172 = vadd.f32 0.0, %v171
  %173 = vmatmul.bf16.gmra.mxu0 %v93
  %v174 = vpop.f32.mrf.mxu0
  %v175 = vadd.f32 0.0, %v174
  %v176 = vpop.f32.mrf.mxu0
  %v177 = vadd.f32 0.0, %v176
  %178 = vmatmul.bf16.gmra.mxu0 %v94
  %v179 = vpop.f32.mrf.mxu0
  %v180 = vadd.f32 0.0, %v179
  %v181 = vpop.f32.mrf.mxu0
  %v182 = vadd.f32 0.0, %v181
  %183 = vmatmul.bf16.gmra.mxu0 %v95
  %v184 = vpop.f32.mrf.mxu0
  %v185 = vadd.f32 0.0, %v184
  %v186 = vpop.f32.mrf.mxu0
  %v187 = vadd.f32 0.0, %v186
  %188 = vmatmul.bf16.gmra.mxu0 %v96
  %v189 = vpop.f32.mrf.mxu0
  %v190 = vadd.f32 0.0, %v189
  %v191 = vpop.f32.mrf.mxu0
  %v192 = vadd.f32 0.0, %v191
  %193 = vmatmul.bf16.gmra.mxu0 %v97
  %v194 = vpop.f32.mrf.mxu0
  %v195 = vadd.f32 0.0, %v194
  %v196 = vpop.f32.mrf.mxu0
  %v197 = vadd.f32 0.0, %v196
  %198 = vmatmul.bf16.gmra.mxu0 %v98
  %v199 = vpop.f32.mrf.mxu0
  %v200 = vadd.f32 0.0, %v199
  %v201 = vpop.f32.mrf.mxu0
  %v202 = vadd.f32 0.0, %v201
  %203 = vdwg.mxu0
  %v204 = vadd.f32 %v165, %v167
  %v205 = vadd.f32 %v204, %v170
  %v206 = vadd.f32 %v205, %v172
  %v207 = vadd.f32 %v206, %v175
  %v208 = vadd.f32 %v207, %v177
  %v209 = vadd.f32 %v208, %v180
  %v210 = vadd.f32 %v209, %v182
  %v211 = vadd.f32 %v210, %v185
  %v212 = vadd.f32 %v211, %v187
  %v213 = vadd.f32 %v212, %v190
  %v214 = vadd.f32 %v213, %v192
  %v215 = vadd.f32 %v214, %v195
  %v216 = vadd.f32 %v215, %v197
  %v217 = vadd.f32 %v216, %v200
  %v218 = vadd.f32 %v217, %v202
  %v219 = vrot.slane %v218, 4
  %v220 = vadd.f32 %v218, %v219
  %v221 = vrot.slane %v220, 2
  %v222 = vadd.f32 %v220, %v221
  %v223 = vrot.slane %v222, 1
  %v224 = vadd.f32 %v222, %v223
  %v225 = vmul.f32 %v224, 0.0078125
  %v226 = vsub.f32 %v165, %v225
  %v227 = vsub.f32 %v167, %v225
  %v228 = vsub.f32 %v170, %v225
  %v229 = vsub.f32 %v172, %v225
  %v230 = vsub.f32 %v175, %v225
  %v231 = vsub.f32 %v177, %v225
  %v232 = vsub.f32 %v180, %v225
  %v233 = vsub.f32 %v182, %v225
  %v234 = vsub.f32 %v185, %v225
  %v235 = vsub.f32 %v187, %v225
  %v236 = vsub.f32 %v190, %v225
  %v237 = vsub.f32 %v192, %v225
  %v238 = vsub.f32 %v195, %v225
  %v239 = vsub.f32 %v197, %v225
  %v240 = vsub.f32 %v200, %v225
  %v241 = vsub.f32 %v202, %v225
  %v242 = vmul.f32 %v226, %v226
  %v243 = vmul.f32 %v227, %v227
  %v244 = vmul.f32 %v228, %v228
  %v245 = vmul.f32 %v229, %v229
  %v246 = vmul.f32 %v230, %v230
  %v247 = vmul.f32 %v231, %v231
  %v248 = vmul.f32 %v232, %v232
  %v249 = vmul.f32 %v233, %v233
  %v250 = vmul.f32 %v234, %v234
  %v251 = vmul.f32 %v235, %v235
  %v252 = vmul.f32 %v236, %v236
  %v253 = vmul.f32 %v237, %v237
  %v254 = vmul.f32 %v238, %v238
  %v255 = vmul.f32 %v239, %v239
  %v256 = vmul.f32 %v240, %v240
  %v257 = vmul.f32 %v241, %v241
  %v258 = vadd.f32 %v242, %v243
  %v259 = vadd.f32 %v258, %v244
  %v260 = vadd.f32 %v259, %v245
  %v261 = vadd.f32 %v260, %v246
  %v262 = vadd.f32 %v261, %v247
  %v263 = vadd.f32 %v262, %v248
  %v264 = vadd.f32 %v263, %v249
  %v265 = vadd.f32 %v264, %v250
  %v266 = vadd.f32 %v265, %v251
  %v267 = vadd.f32 %v266, %v252
  %v268 = vadd.f32 %v267, %v253
  %v269 = vadd.f32 %v268, %v254
  %v270 = vadd.f32 %v269, %v255
  %v271 = vadd.f32 %v270, %v256
  %v272 = vadd.f32 %v271, %v257
  %v273 = vrot.slane %v272, 4
  %v274 = vadd.f32 %v272, %v273
  %v275 = vrot.slane %v274, 2
  %v276 = vadd.f32 %v274, %v275
  %v277 = vrot.slane %v276, 1
  %v278 = vadd.f32 %v276, %v277
  %v279 = vmul.f32 %v278, 0.0078125
  %v280 = vld [vmem:[%s2] sm:$0x1]
  %v281 = vadd.f32 %v279, 1e-05
  %v282 = vrsqrt.pop %v281
  %v283 = vmul.f32 %v282, %v281
  %v284 = vmul.f32 %v283, %v282
  %v285 = vmul.f32 0.5, %v284
  %v286 = vsub.f32 1.5, %v285
  %v287 = vmul.f32 %v282, %v286
  %vm288 = vweird.f32 %v281
  %vm289 = vweird.f32 %v282
  %vm290 = vmor %vm288, %vm289
  %v291 = vsel %vm290, %v282, %v287
  %v292 = vmul.f32 %v280, %v291
  %v293 = vld [vmem:[%s3] sm:$0x1]
  %v294 = vmul.f32 %v225, %v292
  %v295 = vsub.f32 %v293, %v294
  %v297 = vperm.slane %v292, 0
  %v299 = vmul.f32 %v165, %v297
  %v300 = vmul.f32 %v167, %v297
  %v301 = vmul.f32 %v170, %v297
  %v302 = vmul.f32 %v172, %v297
  %v303 = vmul.f32 %v175, %v297
  %v304 = vmul.f32 %v177, %v297
  %v305 = vmul.f32 %v180, %v297
  %v306 = vmul.f32 %v182, %v297
  %v307 = vmul.f32 %v185, %v297
  %v308 = vmul.f32 %v187, %v297
  %v309 = vmul.f32 %v190, %v297
  %v310 = vmul.f32 %v192, %v297
  %v311 = vmul.f32 %v195, %v297
  %v312 = vmul.f32 %v197, %v297
  %v313 = vmul.f32 %v200, %v297
  %v314 = vmul.f32 %v202, %v297
  %v316 = vperm.slane %v295, 0
  %v318 = vadd.f32 %v299, %v316
  %v319 = vadd.f32 %v300, %v316
  %v320 = vadd.f32 %v301, %v316
  %v321 = vadd.f32 %v302, %v316
  %v322 = vadd.f32 %v303, %v316
  %v323 = vadd.f32 %v304, %v316
  %v324 = vadd.f32 %v305, %v316
  %v325 = vadd.f32 %v306, %v316
  %v326 = vadd.f32 %v307, %v316
  %v327 = vadd.f32 %v308, %v316
  %v328 = vadd.f32 %v309, %v316
  %v329 = vadd.f32 %v310, %v316
  %v330 = vadd.f32 %v311, %v316
  %v331 = vadd.f32 %v312, %v316
  %v332 = vadd.f32 %v313, %v316
  %v333 = vadd.f32 %v314, %v316
  %v334 = vmax.f32 %v318, 0.0
  %v335 = vmax.f32 %v319, 0.0
  %v336 = vmax.f32 %v320, 0.0
  %v337 = vmax.f32 %v321, 0.0
  %v338 = vmax.f32 %v322, 0.0
  %v339 = vmax.f32 %v323, 0.0
  %v340 = vmax.f32 %v324, 0.0
  %v341 = vmax.f32 %v325, 0.0
  %v342 = vmax.f32 %v326, 0.0
  %v343 = vmax.f32 %v327, 0.0
  %v344 = vmax.f32 %v328, 0.0
  %v345 = vmax.f32 %v329, 0.0
  %v346 = vmax.f32 %v330, 0.0
  %v347 = vmax.f32 %v331, 0.0
  %v348 = vmax.f32 %v332, 0.0
  %v349 = vmax.f32 %v333, 0.0
  %p350 = scmp.eq.s32.totalorder 0, 0
  // Predicated region
  $region30: #{down_forward.1} parent=0 // pred_check
    %p351 = pneg %p350
  $region31: #{down_forward.1} parent=0 // pred_check_branch
    %353 = sbr.rel (%p351) target = $region33
  $region32: #{down_forward.1} parent=0 // pred_region
    %354 = vst [vmem:[#allocation2] sm:$0xf] 0
    %355 = vst [vmem:[#allocation2 + $0x4] sm:$0x1] 0
    %356 = vst [vmem:[#allocation2 + $0x50] sm:$0xf] 0
    %357 = vst [vmem:[#allocation2 + $0x54] sm:$0x1] 0
    %s358 = scalar_lea.vmem [#allocation2], 72
    %359 = vst [vmem:[%s358] sm:$0xf] 0
    %360 = vst [vmem:[%s358 + $0x4] sm:$0x1] 0
    %361 = vst [vmem:[%s358 + $0x50] sm:$0xf] 0
    %362 = vst [vmem:[%s358 + $0x54] sm:$0x1] 0
    %vm363 = vcmask 1040384
    %vm364 = vsmask.f32 256
    %vm365 = vmand %vm363, %vm364
    %v366 = vld [vmem:[#allocation2] sm:$0x1]
    %v367 = vsel %vm365, 0, %v366
    %368 = vst [vmem:[#allocation2] sm:$0x1] %v367
    %v369 = vld [vmem:[#allocation2 + $0x8] sm:$0x1]
    %v370 = vsel %vm365, 0, %v369
    %371 = vst [vmem:[#allocation2 + $0x8] sm:$0x1] %v370
    %v372 = vld [vmem:[#allocation2 + $0x10] sm:$0x1]
    %v373 = vsel %vm365, 0, %v372
    %374 = vst [vmem:[#allocation2 + $0x10] sm:$0x1] %v373
    %v375 = vld [vmem:[#allocation2 + $0x18] sm:$0x1]
    %v376 = vsel %vm365, 0, %v375
    %377 = vst [vmem:[#allocation2 + $0x18] sm:$0x1] %v376
    %v378 = vld [vmem:[#allocation2 + $0x20] sm:$0x1]
    %v379 = vsel %vm365, 0, %v378
    %380 = vst [vmem:[#allocation2 + $0x20] sm:$0x1] %v379
    %v381 = vld [vmem:[#allocation2 + $0x28] sm:$0x1]
    %v382 = vsel %vm365, 0, %v381
    %383 = vst [vmem:[#allocation2 + $0x28] sm:$0x1] %v382
    %v384 = vld [vmem:[#allocation2 + $0x30] sm:$0x1]
    %v385 = vsel %vm365, 0, %v384
    %386 = vst [vmem:[#allocation2 + $0x30] sm:$0x1] %v385
    %v387 = vld [vmem:[#allocation2 + $0x38] sm:$0x1]
    %v388 = vsel %vm365, 0, %v387
    %389 = vst [vmem:[#allocation2 + $0x38] sm:$0x1] %v388
    %v390 = vld [vmem:[#allocation2 + $0x40] sm:$0x1]
    %v391 = vsel %vm365, 0, %v390
    %392 = vst [vmem:[#allocation2 + $0x40] sm:$0x1] %v391
    %v393 = vld [vmem:[#allocation2 + $0x48] sm:$0x1]
    %v394 = vsel %vm365, 0, %v393
    %395 = vst [vmem:[#allocation2 + $0x48] sm:$0x1] %v394
    %v396 = vld [vmem:[#allocation2 + $0x50] sm:$0x1]
    %v397 = vsel %vm365, 0, %v396
    %398 = vst [vmem:[#allocation2 + $0x50] sm:$0x1] %v397
    %v399 = vld [vmem:[#allocation2 + $0x58] sm:$0x1]
    %v400 = vsel %vm365, 0, %v399
    %401 = vst [vmem:[#allocation2 + $0x58] sm:$0x1] %v400
    %v402 = vld [vmem:[#allocation2 + $0x60] sm:$0x1]
    %v403 = vsel %vm365, 0, %v402
    %404 = vst [vmem:[#allocation2 + $0x60] sm:$0x1] %v403
    %v405 = vld [vmem:[#allocation2 + $0x68] sm:$0x1]
    %v406 = vsel %vm365, 0, %v405
    %407 = vst [vmem:[#allocation2 + $0x68] sm:$0x1] %v406
    %v408 = vld [vmem:[#allocation2 + $0x70] sm:$0x1]
    %v409 = vsel %vm365, 0, %v408
    %410 = vst [vmem:[#allocation2 + $0x70] sm:$0x1] %v409
    %v411 = vld [vmem:[#allocation2 + $0x78] sm:$0x1]
    %v412 = vsel %vm365, 0, %v411
    %413 = vst [vmem:[#allocation2 + $0x78] sm:$0x1] %v412
    %v414 = vld [vmem:[#allocation2 + $0x80] sm:$0x1]
    %v415 = vsel %vm365, 0, %v414
    %416 = vst [vmem:[#allocation2 + $0x80] sm:$0x1] %v415
    %v417 = vld [vmem:[#allocation2 + $0x88] sm:$0x1]
    %v418 = vsel %vm365, 0, %v417
    %419 = vst [vmem:[#allocation2 + $0x88] sm:$0x1] %v418
    %v420 = vld [vmem:[#allocation2 + $0x90] sm:$0x1]
    %v421 = vsel %vm365, 0, %v420
    %422 = vst [vmem:[#allocation2 + $0x90] sm:$0x1] %v421
    %v423 = vld [vmem:[#allocation2 + $0x98] sm:$0x1]
    %v424 = vsel %vm365, 0, %v423
    %425 = vst [vmem:[#allocation2 + $0x98] sm:$0x1] %v424
    %vm426 = vsmask.f32 7938
    %vm427 = vmand %vm363, %vm426
    %v428 = vld [vmem:[#allocation2 + $0x4] sm:$0x1]
    %v429 = vsel %vm427, 0, %v428
    %430 = vst [vmem:[#allocation2 + $0x4] sm:$0x1] %v429
    %v431 = vld [vmem:[#allocation2 + $0xc] sm:$0x1]
    %v432 = vsel %vm427, 0, %v431
    %433 = vst [vmem:[#allocation2 + $0xc] sm:$0x1] %v432
    %v434 = vld [vmem:[#allocation2 + $0x14] sm:$0x1]
    %v435 = vsel %vm427, 0, %v434
    %436 = vst [vmem:[#allocation2 + $0x14] sm:$0x1] %v435
    %v437 = vld [vmem:[#allocation2 + $0x1c] sm:$0x1]
    %v438 = vsel %vm427, 0, %v437
    %439 = vst [vmem:[#allocation2 + $0x1c] sm:$0x1] %v438
    %v440 = vld [vmem:[#allocation2 + $0x24] sm:$0x1]
    %v441 = vsel %vm427, 0, %v440
    %442 = vst [vmem:[#allocation2 + $0x24] sm:$0x1] %v441
    %v443 = vld [vmem:[#allocation2 + $0x2c] sm:$0x1]
    %v444 = vsel %vm427, 0, %v443
    %445 = vst [vmem:[#allocation2 + $0x2c] sm:$0x1] %v444
    %v446 = vld [vmem:[#allocation2 + $0x34] sm:$0x1]
    %v447 = vsel %vm427, 0, %v446
    %448 = vst [vmem:[#allocation2 + $0x34] sm:$0x1] %v447
    %v449 = vld [vmem:[#allocation2 + $0x3c] sm:$0x1]
    %v450 = vsel %vm427, 0, %v449
    %451 = vst [vmem:[#allocation2 + $0x3c] sm:$0x1] %v450
    %v452 = vld [vmem:[#allocation2 + $0x44] sm:$0x1]
    %v453 = vsel %vm427, 0, %v452
    %454 = vst [vmem:[#allocation2 + $0x44] sm:$0x1] %v453
    %v455 = vld [vmem:[#allocation2 + $0x4c] sm:$0x1]
    %v456 = vsel %vm427, 0, %v455
    %457 = vst [vmem:[#allocation2 + $0x4c] sm:$0x1] %v456
    %v458 = vld [vmem:[#allocation2 + $0x54] sm:$0x1]
    %v459 = vsel %vm427, 0, %v458
    %460 = vst [vmem:[#allocation2 + $0x54] sm:$0x1] %v459
    %v461 = vld [vmem:[#allocation2 + $0x5c] sm:$0x1]
    %v462 = vsel %vm427, 0, %v461
    %463 = vst [vmem:[#allocation2 + $0x5c] sm:$0x1] %v462
    %v464 = vld [vmem:[#allocation2 + $0x64] sm:$0x1]
    %v465 = vsel %vm427, 0, %v464
    %466 = vst [vmem:[#allocation2 + $0x64] sm:$0x1] %v465
    %v467 = vld [vmem:[#allocation2 + $0x6c] sm:$0x1]
    %v468 = vsel %vm427, 0, %v467
    %469 = vst [vmem:[#allocation2 + $0x6c] sm:$0x1] %v468
    %v470 = vld [vmem:[#allocation2 + $0x74] sm:$0x1]
    %v471 = vsel %vm427, 0, %v470
    %472 = vst [vmem:[#allocation2 + $0x74] sm:$0x1] %v471
    %v473 = vld [vmem:[#allocation2 + $0x7c] sm:$0x1]
    %v474 = vsel %vm427, 0, %v473
    %475 = vst [vmem:[#allocation2 + $0x7c] sm:$0x1] %v474
    %v476 = vld [vmem:[#allocation2 + $0x84] sm:$0x1]
    %v477 = vsel %vm427, 0, %v476
    %478 = vst [vmem:[#allocation2 + $0x84] sm:$0x1] %v477
    %v479 = vld [vmem:[#allocation2 + $0x8c] sm:$0x1]
    %v480 = vsel %vm427, 0, %v479
    %481 = vst [vmem:[#allocation2 + $0x8c] sm:$0x1] %v480
    %v482 = vld [vmem:[#allocation2 + $0x94] sm:$0x1]
    %v483 = vsel %vm427, 0, %v482
    %484 = vst [vmem:[#allocation2 + $0x94] sm:$0x1] %v483
    %v485 = vld [vmem:[#allocation2 + $0x9c] sm:$0x1]
    %v486 = vsel %vm427, 0, %v485
    %487 = vst [vmem:[#allocation2 + $0x9c] sm:$0x1] %v486
  $region33: #{down_forward.1} parent=0 // pred_fallthru
    _
  %v488 = vpack.c.bf16 %v334, %v334
  %v489 = vpack.c.bf16 %v335, %v335
  %v490 = vpack.c.bf16 %v336, %v336
  %v491 = vpack.c.bf16 %v337, %v337
  %v492 = vpack.c.bf16 %v338, %v338
  %v493 = vpack.c.bf16 %v339, %v339
  %v494 = vpack.c.bf16 %v340, %v340
  %v495 = vpack.c.bf16 %v341, %v341
  %v496 = vpack.c.bf16 %v342, %v342
  %v497 = vpack.c.bf16 %v343, %v343
  %v498 = vpack.c.bf16 %v344, %v344
  %v499 = vpack.c.bf16 %v345, %v345
  %v500 = vpack.c.bf16 %v346, %v346
  %v501 = vpack.c.bf16 %v347, %v347
  %v502 = vpack.c.bf16 %v348, %v348
  %v503 = vpack.c.bf16 %v349, %v349
  %v505 = vshrl.u32 %v488, 16
  %v507 = vrot.slane %v505, 7
  %v508 = vshll.u32 %v488, 16
  %v510 = vor.u32 %v507, %v508
  %v511 = vrot.slane %v507, 4
  %v513 = vshrl.u32 %v489, 16
  %v515 = vrot.slane %v513, 7
  %v516 = vshll.u32 %v489, 16
  %v518 = vor.u32 %v515, %v516
  %v519 = vrot.slane %v515, 4
  %v521 = vshrl.u32 %v490, 16
  %v523 = vrot.slane %v521, 7
  %v524 = vshll.u32 %v490, 16
  %v526 = vor.u32 %v523, %v524
  %v527 = vrot.slane %v523, 4
  %v529 = vshrl.u32 %v491, 16
  %v531 = vrot.slane %v529, 7
  %v532 = vshll.u32 %v491, 16
  %v534 = vor.u32 %v531, %v532
  %v535 = vrot.slane %v531, 4
  %v537 = vshrl.u32 %v492, 16
  %v539 = vrot.slane %v537, 7
  %v540 = vshll.u32 %v492, 16
  %v542 = vor.u32 %v539, %v540
  %v543 = vrot.slane %v539, 4
  %v545 = vshrl.u32 %v493, 16
  %v547 = vrot.slane %v545, 7
  %v548 = vshll.u32 %v493, 16
  %v550 = vor.u32 %v547, %v548
  %v551 = vrot.slane %v547, 4
  %v553 = vshrl.u32 %v494, 16
  %v555 = vrot.slane %v553, 7
  %v556 = vshll.u32 %v494, 16
  %v558 = vor.u32 %v555, %v556
  %v559 = vrot.slane %v555, 4
  %v561 = vshrl.u32 %v495, 16
  %v563 = vrot.slane %v561, 7
  %v564 = vshll.u32 %v495, 16
  %v566 = vor.u32 %v563, %v564
  %v567 = vrot.slane %v563, 4
  %v569 = vshrl.u32 %v496, 16
  %v571 = vrot.slane %v569, 7
  %v572 = vshll.u32 %v496, 16
  %v574 = vor.u32 %v571, %v572
  %v575 = vrot.slane %v571, 4
  %v577 = vshrl.u32 %v497, 16
  %v579 = vrot.slane %v577, 7
  %v580 = vshll.u32 %v497, 16
  %v582 = vor.u32 %v579, %v580
  %v583 = vrot.slane %v579, 4
  %v585 = vshrl.u32 %v498, 16
  %v587 = vrot.slane %v585, 7
  %v588 = vshll.u32 %v498, 16
  %v590 = vor.u32 %v587, %v588
  %v591 = vrot.slane %v587, 4
  %v593 = vshrl.u32 %v499, 16
  %v595 = vrot.slane %v593, 7
  %v596 = vshll.u32 %v499, 16
  %v598 = vor.u32 %v595, %v596
  %v599 = vrot.slane %v595, 4
  %v601 = vshrl.u32 %v500, 16
  %v603 = vrot.slane %v601, 7
  %v604 = vshll.u32 %v500, 16
  %v606 = vor.u32 %v603, %v604
  %v607 = vrot.slane %v603, 4
  %v609 = vshrl.u32 %v501, 16
  %v611 = vrot.slane %v609, 7
  %v612 = vshll.u32 %v501, 16
  %v614 = vor.u32 %v611, %v612
  %v615 = vrot.slane %v611, 4
  %v617 = vshrl.u32 %v502, 16
  %v619 = vrot.slane %v617, 7
  %v620 = vshll.u32 %v502, 16
  %v622 = vor.u32 %v619, %v620
  %v623 = vrot.slane %v619, 4
  %v625 = vshrl.u32 %v503, 16
  %v627 = vrot.slane %v625, 7
  %v628 = vshll.u32 %v503, 16
  %v630 = vor.u32 %v627, %v628
  %v631 = vrot.slane %v627, 4
  %s664 = scalar_lea.vmem [#allocation2], 8
  %vm665 = vcmask 1043456
  %vm666 = vsmask.f32 7938
  %vm667 = vmand %vm665, %vm666
  %v668 = vld [vmem:[%s664] sm:$0xf]
  %v669 = vsel %vm667, %v510, %v668
  %670 = vst [vmem:[%s664] sm:$0xf] %v669
  %vm671 = vcmask 1040384
  %vm672 = vsmask.f32 256
  %vm673 = vmand %vm671, %vm672
  %v674 = vld [vmem:[%s664 + $0x4] sm:$0x1]
  %v675 = vsel %vm673, %v511, %v674
  %676 = vst [vmem:[%s664 + $0x4] sm:$0x1] %v675
  %v677 = vld [vmem:[%s664 + $0x8] sm:$0xf]
  %v678 = vsel %vm667, %v518, %v677
  %679 = vst [vmem:[%s664 + $0x8] sm:$0xf] %v678
  %v680 = vld [vmem:[%s664 + $0xc] sm:$0x1]
  %v681 = vsel %vm673, %v519, %v680
  %682 = vst [vmem:[%s664 + $0xc] sm:$0x1] %v681
  %v683 = vld [vmem:[%s664 + $0x10] sm:$0xf]
  %v684 = vsel %vm667, %v526, %v683
  %685 = vst [vmem:[%s664 + $0x10] sm:$0xf] %v684
  %v686 = vld [vmem:[%s664 + $0x14] sm:$0x1]
  %v687 = vsel %vm673, %v527, %v686
  %688 = vst [vmem:[%s664 + $0x14] sm:$0x1] %v687
  %v689 = vld [vmem:[%s664 + $0x18] sm:$0xf]
  %v690 = vsel %vm667, %v534, %v689
  %691 = vst [vmem:[%s664 + $0x18] sm:$0xf] %v690
  %v692 = vld [vmem:[%s664 + $0x1c] sm:$0x1]
  %v693 = vsel %vm673, %v535, %v692
  %694 = vst [vmem:[%s664 + $0x1c] sm:$0x1] %v693
  %v695 = vld [vmem:[%s664 + $0x20] sm:$0xf]
  %v696 = vsel %vm667, %v542, %v695
  %697 = vst [vmem:[%s664 + $0x20] sm:$0xf] %v696
  %v698 = vld [vmem:[%s664 + $0x24] sm:$0x1]
  %v699 = vsel %vm673, %v543, %v698
  %700 = vst [vmem:[%s664 + $0x24] sm:$0x1] %v699
  %v701 = vld [vmem:[%s664 + $0x28] sm:$0xf]
  %v702 = vsel %vm667, %v550, %v701
  %703 = vst [vmem:[%s664 + $0x28] sm:$0xf] %v702
  %v704 = vld [vmem:[%s664 + $0x2c] sm:$0x1]
  %v705 = vsel %vm673, %v551, %v704
  %706 = vst [vmem:[%s664 + $0x2c] sm:$0x1] %v705
  %v707 = vld [vmem:[%s664 + $0x30] sm:$0xf]
  %v708 = vsel %vm667, %v558, %v707
  %709 = vst [vmem:[%s664 + $0x30] sm:$0xf] %v708
  %v710 = vld [vmem:[%s664 + $0x34] sm:$0x1]
  %v711 = vsel %vm673, %v559, %v710
  %712 = vst [vmem:[%s664 + $0x34] sm:$0x1] %v711
  %v713 = vld [vmem:[%s664 + $0x38] sm:$0xf]
  %v714 = vsel %vm667, %v566, %v713
  %715 = vst [vmem:[%s664 + $0x38] sm:$0xf] %v714
  %v716 = vld [vmem:[%s664 + $0x3c] sm:$0x1]
  %v717 = vsel %vm673, %v567, %v716
  %718 = vst [vmem:[%s664 + $0x3c] sm:$0x1] %v717
  %v719 = vld [vmem:[%s664 + $0x50] sm:$0xf]
  %v720 = vsel %vm667, %v574, %v719
  %721 = vst [vmem:[%s664 + $0x50] sm:$0xf] %v720
  %v722 = vld [vmem:[%s664 + $0x54] sm:$0x1]
  %v723 = vsel %vm673, %v575, %v722
  %724 = vst [vmem:[%s664 + $0x54] sm:$0x1] %v723
  %v725 = vld [vmem:[%s664 + $0x58] sm:$0xf]
  %v726 = vsel %vm667, %v582, %v725
  %727 = vst [vmem:[%s664 + $0x58] sm:$0xf] %v726
  %v728 = vld [vmem:[%s664 + $0x5c] sm:$0x1]
  %v729 = vsel %vm673, %v583, %v728
  %730 = vst [vmem:[%s664 + $0x5c] sm:$0x1] %v729
  %v731 = vld [vmem:[%s664 + $0x60] sm:$0xf]
  %v732 = vsel %vm667, %v590, %v731
  %733 = vst [vmem:[%s664 + $0x60] sm:$0xf] %v732
  %v734 = vld [vmem:[%s664 + $0x64] sm:$0x1]
  %v735 = vsel %vm673, %v591, %v734
  %736 = vst [vmem:[%s664 + $0x64] sm:$0x1] %v735
  %v737 = vld [vmem:[%s664 + $0x68] sm:$0xf]
  %v738 = vsel %vm667, %v598, %v737
  %739 = vst [vmem:[%s664 + $0x68] sm:$0xf] %v738
  %v740 = vld [vmem:[%s664 + $0x6c] sm:$0x1]
  %v741 = vsel %vm673, %v599, %v740
  %742 = vst [vmem:[%s664 + $0x6c] sm:$0x1] %v741
  %v743 = vld [vmem:[%s664 + $0x70] sm:$0xf]
  %v744 = vsel %vm667, %v606, %v743
  %745 = vst [vmem:[%s664 + $0x70] sm:$0xf] %v744
  %v746 = vld [vmem:[%s664 + $0x74] sm:$0x1]
  %v747 = vsel %vm673, %v607, %v746
  %748 = vst [vmem:[%s664 + $0x74] sm:$0x1] %v747
  %v749 = vld [vmem:[%s664 + $0x78] sm:$0xf]
  %v750 = vsel %vm667, %v614, %v749
  %751 = vst [vmem:[%s664 + $0x78] sm:$0xf] %v750
  %v752 = vld [vmem:[%s664 + $0x7c] sm:$0x1]
  %v753 = vsel %vm673, %v615, %v752
  %754 = vst [vmem:[%s664 + $0x7c] sm:$0x1] %v753
  %v755 = vld [vmem:[%s664 + $0x80] sm:$0xf]
  %v756 = vsel %vm667, %v622, %v755
  %757 = vst [vmem:[%s664 + $0x80] sm:$0xf] %v756
  %v758 = vld [vmem:[%s664 + $0x84] sm:$0x1]
  %v759 = vsel %vm673, %v623, %v758
  %760 = vst [vmem:[%s664 + $0x84] sm:$0x1] %v759
  %v761 = vld [vmem:[%s664 + $0x88] sm:$0xf]
  %v762 = vsel %vm667, %v630, %v761
  %763 = vst [vmem:[%s664 + $0x88] sm:$0xf] %v762
  %v764 = vld [vmem:[%s664 + $0x8c] sm:$0x1]
  %v765 = vsel %vm673, %v631, %v764
  %766 = vst [vmem:[%s664 + $0x8c] sm:$0x1] %v765
  %v767 = vld [vmem:[#allocation2] sm:$0xf]
  %v768 = vld [vmem:[#allocation2 + $0x4] sm:$0x1]
  %v769 = vld [vmem:[#allocation2 + $0x8] sm:$0xf]
  %v770 = vld [vmem:[#allocation2 + $0xc] sm:$0x1]
  %v771 = vld [vmem:[#allocation2 + $0x10] sm:$0xf]
  %v772 = vld [vmem:[#allocation2 + $0x14] sm:$0x1]
  %v773 = vld [vmem:[#allocation2 + $0x18] sm:$0xf]
  %v774 = vld [vmem:[#allocation2 + $0x1c] sm:$0x1]
  %v775 = vld [vmem:[#allocation2 + $0x20] sm:$0xf]
  %v776 = vld [vmem:[#allocation2 + $0x24] sm:$0x1]
  %v777 = vld [vmem:[#allocation2 + $0x28] sm:$0xf]
  %v778 = vld [vmem:[#allocation2 + $0x2c] sm:$0x1]
  %v779 = vld [vmem:[#allocation2 + $0x30] sm:$0xf]
  %v780 = vld [vmem:[#allocation2 + $0x34] sm:$0x1]
  %v781 = vld [vmem:[#allocation2 + $0x38] sm:$0xf]
  %v782 = vld [vmem:[#allocation2 + $0x3c] sm:$0x1]
  %v783 = vld [vmem:[#allocation2 + $0x40] sm:$0xf]
  %v784 = vld [vmem:[#allocation2 + $0x44] sm:$0x1]
  %v785 = vld [vmem:[#allocation2 + $0x48] sm:$0xf]
  %v786 = vld [vmem:[#allocation2 + $0x4c] sm:$0x1]
  %v787 = vld [vmem:[#allocation2 + $0x50] sm:$0xf]
  %v788 = vld [vmem:[#allocation2 + $0x54] sm:$0x1]
  %v789 = vld [vmem:[#allocation2 + $0x58] sm:$0xf]
  %v790 = vld [vmem:[#allocation2 + $0x5c] sm:$0x1]
  %v791 = vld [vmem:[#allocation2 + $0x60] sm:$0xf]
  %v792 = vld [vmem:[#allocation2 + $0x64] sm:$0x1]
  %v793 = vld [vmem:[#allocation2 + $0x68] sm:$0xf]
  %v794 = vld [vmem:[#allocation2 + $0x6c] sm:$0x1]
  %v795 = vld [vmem:[#allocation2 + $0x70] sm:$0xf]
  %v796 = vld [vmem:[#allocation2 + $0x74] sm:$0x1]
  %v797 = vld [vmem:[#allocation2 + $0x78] sm:$0xf]
  %v798 = vld [vmem:[#allocation2 + $0x7c] sm:$0x1]
  %v799 = vld [vmem:[#allocation2 + $0x80] sm:$0xf]
  %v800 = vld [vmem:[#allocation2 + $0x84] sm:$0x1]
  %v801 = vld [vmem:[#allocation2 + $0x88] sm:$0xf]
  %v802 = vld [vmem:[#allocation2 + $0x8c] sm:$0x1]
  %v803 = vld [vmem:[#allocation2 + $0x90] sm:$0xf]
  %v804 = vld [vmem:[#allocation2 + $0x94] sm:$0x1]
  %v805 = vld [vmem:[#allocation2 + $0x98] sm:$0xf]
  %v806 = vld [vmem:[#allocation2 + $0x9c] sm:$0x1]
  %v807 = vld [vmem:[%s4] sm:$0xf]
  %v808 = vld [vmem:[%s4 + $0x4] sm:$0xf]
  %v809 = vld [vmem:[%s4 + $0x8] sm:$0xf]
  %v810 = vld [vmem:[%s4 + $0xc] sm:$0xf]
  %v811 = vld [vmem:[%s4 + $0x10] sm:$0xf]
  %v812 = vld [vmem:[%s4 + $0x14] sm:$0xf]
  %v813 = vld [vmem:[%s4 + $0x18] sm:$0xf]
  %v814 = vld [vmem:[%s4 + $0x1c] sm:$0xf]
  %v815 = vld [vmem:[%s4 + $0x20] sm:$0xf]
  %v816 = vld [vmem:[%s4 + $0x24] sm:$0xf]
  %v817 = vld [vmem:[%s4 + $0x28] sm:$0xf]
  %v818 = vld [vmem:[%s4 + $0x2c] sm:$0xf]
  %v819 = vld [vmem:[%s4 + $0x30] sm:$0xf]
  %v820 = vld [vmem:[%s4 + $0x34] sm:$0xf]
  %v821 = vld [vmem:[%s4 + $0x38] sm:$0xf]
  %v822 = vld [vmem:[%s4 + $0x3c] sm:$0xf]
  %vm823 = vsmask.f32 3328
  %vm824 = vsmask.f32 7440
  %vm825 = vmor %vm823, %vm824
  %v827 = vshrl.u32 %v767, 16
  %v829 = vrot.slane %v827, 4
  %v830 = vshll.u32 %v767, 16
  %v832 = vrot.slane %v830, 5
  %v833 = vor.u32 %v829, %v832
  %v834 = vrot.slane %v833, 4
  %v836 = vshll.u32 %v768, 16
  %v838 = vrot.slane %v836, 5
  %v839 = vsel %vm825, %v834, %v838
  %v841 = vshrl.u32 %v769, 16
  %v843 = vrot.slane %v841, 4
  %v844 = vshll.u32 %v769, 16
  %v846 = vrot.slane %v844, 5
  %v847 = vor.u32 %v843, %v846
  %v848 = vrot.slane %v847, 4
  %v850 = vshll.u32 %v770, 16
  %v852 = vrot.slane %v850, 5
  %v853 = vsel %vm825, %v848, %v852
  %v855 = vshrl.u32 %v771, 16
  %v857 = vrot.slane %v855, 4
  %v858 = vshll.u32 %v771, 16
  %v860 = vrot.slane %v858, 5
  %v861 = vor.u32 %v857, %v860
  %v862 = vrot.slane %v861, 4
  %v864 = vshll.u32 %v772, 16
  %v866 = vrot.slane %v864, 5
  %v867 = vsel %vm825, %v862, %v866
  %v869 = vshrl.u32 %v773, 16
  %v871 = vrot.slane %v869, 4
  %v872 = vshll.u32 %v773, 16
  %v874 = vrot.slane %v872, 5
  %v875 = vor.u32 %v871, %v874
  %v876 = vrot.slane %v875, 4
  %v878 = vshll.u32 %v774, 16
  %v880 = vrot.slane %v878, 5
  %v881 = vsel %vm825, %v876, %v880
  %v883 = vshrl.u32 %v775, 16
  %v885 = vrot.slane %v883, 4
  %v886 = vshll.u32 %v775, 16
  %v888 = vrot.slane %v886, 5
  %v889 = vor.u32 %v885, %v888
  %v890 = vrot.slane %v889, 4
  %v892 = vshll.u32 %v776, 16
  %v894 = vrot.slane %v892, 5
  %v895 = vsel %vm825, %v890, %v894
  %v897 = vshrl.u32 %v777, 16
  %v899 = vrot.slane %v897, 4
  %v900 = vshll.u32 %v777, 16
  %v902 = vrot.slane %v900, 5
  %v903 = vor.u32 %v899, %v902
  %v904 = vrot.slane %v903, 4
  %v906 = vshll.u32 %v778, 16
  %v908 = vrot.slane %v906, 5
  %v909 = vsel %vm825, %v904, %v908
  %v911 = vshrl.u32 %v779, 16
  %v913 = vrot.slane %v911, 4
  %v914 = vshll.u32 %v779, 16
  %v916 = vrot.slane %v914, 5
  %v917 = vor.u32 %v913, %v916
  %v918 = vrot.slane %v917, 4
  %v920 = vshll.u32 %v780, 16
  %v922 = vrot.slane %v920, 5
  %v923 = vsel %vm825, %v918, %v922
  %v925 = vshrl.u32 %v781, 16
  %v927 = vrot.slane %v925, 4
  %v928 = vshll.u32 %v781, 16
  %v930 = vrot.slane %v928, 5
  %v931 = vor.u32 %v927, %v930
  %v932 = vrot.slane %v931, 4
  %v934 = vshll.u32 %v782, 16
  %v936 = vrot.slane %v934, 5
  %v937 = vsel %vm825, %v932, %v936
  %v939 = vshrl.u32 %v787, 16
  %v941 = vrot.slane %v939, 4
  %v942 = vshll.u32 %v787, 16
  %v944 = vrot.slane %v942, 5
  %v945 = vor.u32 %v941, %v944
  %v946 = vrot.slane %v945, 4
  %v948 = vshll.u32 %v788, 16
  %v950 = vrot.slane %v948, 5
  %v951 = vsel %vm825, %v946, %v950
  %v953 = vshrl.u32 %v789, 16
  %v955 = vrot.slane %v953, 4
  %v956 = vshll.u32 %v789, 16
  %v958 = vrot.slane %v956, 5
  %v959 = vor.u32 %v955, %v958
  %v960 = vrot.slane %v959, 4
  %v962 = vshll.u32 %v790, 16
  %v964 = vrot.slane %v962, 5
  %v965 = vsel %vm825, %v960, %v964
  %v967 = vshrl.u32 %v791, 16
  %v969 = vrot.slane %v967, 4
  %v970 = vshll.u32 %v791, 16
  %v972 = vrot.slane %v970, 5
  %v973 = vor.u32 %v969, %v972
  %v974 = vrot.slane %v973, 4
  %v976 = vshll.u32 %v792, 16
  %v978 = vrot.slane %v976, 5
  %v979 = vsel %vm825, %v974, %v978
  %v981 = vshrl.u32 %v793, 16
  %v983 = vrot.slane %v981, 4
  %v984 = vshll.u32 %v793, 16
  %v986 = vrot.slane %v984, 5
  %v987 = vor.u32 %v983, %v986
  %v988 = vrot.slane %v987, 4
  %v990 = vshll.u32 %v794, 16
  %v992 = vrot.slane %v990, 5
  %v993 = vsel %vm825, %v988, %v992
  %v995 = vshrl.u32 %v795, 16
  %v997 = vrot.slane %v995, 4
  %v998 = vshll.u32 %v795, 16
  %v1000 = vrot.slane %v998, 5
  %v1001 = vor.u32 %v997, %v1000
  %v1002 = vrot.slane %v1001, 4
  %v1004 = vshll.u32 %v796, 16
  %v1006 = vrot.slane %v1004, 5
  %v1007 = vsel %vm825, %v1002, %v1006
  %v1009 = vshrl.u32 %v797, 16
  %v1011 = vrot.slane %v1009, 4
  %v1012 = vshll.u32 %v797, 16
  %v1014 = vrot.slane %v1012, 5
  %v1015 = vor.u32 %v1011, %v1014
  %v1016 = vrot.slane %v1015, 4
  %v1018 = vshll.u32 %v798, 16
  %v1020 = vrot.slane %v1018, 5
  %v1021 = vsel %vm825, %v1016, %v1020
  %v1023 = vshrl.u32 %v799, 16
  %v1025 = vrot.slane %v1023, 4
  %v1026 = vshll.u32 %v799, 16
  %v1028 = vrot.slane %v1026, 5
  %v1029 = vor.u32 %v1025, %v1028
  %v1030 = vrot.slane %v1029, 4
  %v1032 = vshll.u32 %v800, 16
  %v1034 = vrot.slane %v1032, 5
  %v1035 = vsel %vm825, %v1030, %v1034
  %v1037 = vshrl.u32 %v801, 16
  %v1039 = vrot.slane %v1037, 4
  %v1040 = vshll.u32 %v801, 16
  %v1042 = vrot.slane %v1040, 5
  %v1043 = vor.u32 %v1039, %v1042
  %v1044 = vrot.slane %v1043, 4
  %v1046 = vshll.u32 %v802, 16
  %v1048 = vrot.slane %v1046, 5
  %v1049 = vsel %vm825, %v1044, %v1048
  %s1050 = scalar_lea.vmem %s4, 64
  %v1051 = vld [vmem:[%s1050] sm:$0xf]
  %v1052 = vld [vmem:[%s1050 + $0x4] sm:$0xf]
  %v1053 = vld [vmem:[%s1050 + $0x8] sm:$0xf]
  %v1054 = vld [vmem:[%s1050 + $0xc] sm:$0xf]
  %v1055 = vld [vmem:[%s1050 + $0x10] sm:$0xf]
  %v1056 = vld [vmem:[%s1050 + $0x14] sm:$0xf]
  %v1057 = vld [vmem:[%s1050 + $0x18] sm:$0xf]
  %v1058 = vld [vmem:[%s1050 + $0x1c] sm:$0xf]
  %v1059 = vld [vmem:[%s1050 + $0x20] sm:$0xf]
  %v1060 = vld [vmem:[%s1050 + $0x24] sm:$0xf]
  %v1061 = vld [vmem:[%s1050 + $0x28] sm:$0xf]
  %v1062 = vld [vmem:[%s1050 + $0x2c] sm:$0xf]
  %v1063 = vld [vmem:[%s1050 + $0x30] sm:$0xf]
  %v1064 = vld [vmem:[%s1050 + $0x34] sm:$0xf]
  %v1065 = vld [vmem:[%s1050 + $0x38] sm:$0xf]
  %v1066 = vld [vmem:[%s1050 + $0x3c] sm:$0xf]
  %v1067 = vunpack.c.l.b16 %v839
  %v1068 = vunpack.c.l.b16 %v853
  %v1069 = vunpack.c.l.b16 %v867
  %v1070 = vunpack.c.l.b16 %v881
  %v1071 = vunpack.c.l.b16 %v895
  %v1072 = vunpack.c.l.b16 %v909
  %v1073 = vunpack.c.l.b16 %v923
  %v1074 = vunpack.c.l.b16 %v937
  %v1075 = vunpack.c.l.b16 %v951
  %v1076 = vunpack.c.l.b16 %v965
  %v1077 = vunpack.c.l.b16 %v979
  %v1078 = vunpack.c.l.b16 %v993
  %v1079 = vunpack.c.l.b16 %v1007
  %v1080 = vunpack.c.l.b16 %v1021
  %v1081 = vunpack.c.l.b16 %v1035
  %v1082 = vunpack.c.l.b16 %v1049
  %v1083 = vpack.c.b16 %v1068, %v1067
  %v1084 = vpack.c.b16 %v1070, %v1069
  %v1085 = vpack.c.b16 %v1072, %v1071
  %v1086 = vpack.c.b16 %v1074, %v1073
  %v1087 = vpack.c.b16 %v1076, %v1075
  %v1088 = vpack.c.b16 %v1078, %v1077
  %v1089 = vpack.c.b16 %v1080, %v1079
  %v1090 = vpack.c.b16 %v1082, %v1081
  %v1115 = vunpack.c.l.b16 %v1051
  %v1116 = vunpack.c.l.b16 %v1052
  %v1117 = vunpack.c.l.b16 %v1053
  %v1118 = vunpack.c.l.b16 %v1054
  %v1119 = vunpack.c.l.b16 %v1055
  %v1120 = vunpack.c.l.b16 %v1056
  %v1121 = vunpack.c.l.b16 %v1057
  %v1122 = vunpack.c.l.b16 %v1058
  %v1123 = vunpack.c.l.b16 %v1059
  %v1124 = vunpack.c.l.b16 %v1060
  %v1125 = vunpack.c.l.b16 %v1061
  %v1126 = vunpack.c.l.b16 %v1062
  %v1127 = vunpack.c.l.b16 %v1063
  %v1128 = vunpack.c.l.b16 %v1064
  %v1129 = vunpack.c.l.b16 %v1065
  %v1130 = vunpack.c.l.b16 %v1066
  %v1131 = vpack.c.b16 %v1116, %v1115
  %v1132 = vpack.c.b16 %v1118, %v1117
  %v1133 = vpack.c.b16 %v1120, %v1119
  %v1134 = vpack.c.b16 %v1122, %v1121
  %v1135 = vpack.c.b16 %v1124, %v1123
  %v1136 = vpack.c.b16 %v1126, %v1125
  %v1137 = vpack.c.b16 %v1128, %v1127
  %v1138 = vpack.c.b16 %v1130, %v1129
  %1147 = vmatpush.bf16.msra.mxu0 %v1138
  %1148 = vmatpush.bf16.msra.mxu0 %v1137
  %1149 = vmatpush.bf16.msra.mxu0 %v1136
  %1150 = vmatpush.bf16.msra.mxu0 %v1135
  %1151 = vmatpush.bf16.msra.mxu0 %v1134
  %1152 = vmatpush.bf16.msra.mxu0 %v1133
  %1153 = vmatpush.bf16.msra.mxu0 %v1132
  %1154 = vmatpush.bf16.msra.mxu0 %v1131
  %1155 = vmatmul.bf16.gmra.mxu0 %v1083
  %v1156 = vpop.f32.mrf.mxu0
  %v1157 = vadd.f32 0.0, %v1156
  %v1158 = vpop.f32.mrf.mxu0
  %v1159 = vadd.f32 0.0, %v1158
  %1160 = vmatmul.bf16.gmra.mxu0 %v1084
  %v1161 = vpop.f32.mrf.mxu0
  %v1162 = vadd.f32 0.0, %v1161
  %v1163 = vpop.f32.mrf.mxu0
  %v1164 = vadd.f32 0.0, %v1163
  %1165 = vmatmul.bf16.gmra.mxu0 %v1085
  %v1166 = vpop.f32.mrf.mxu0
  %v1167 = vadd.f32 0.0, %v1166
  %v1168 = vpop.f32.mrf.mxu0
  %v1169 = vadd.f32 0.0, %v1168
  %1170 = vmatmul.bf16.gmra.mxu0 %v1086
  %v1171 = vpop.f32.mrf.mxu0
  %v1172 = vadd.f32 0.0, %v1171
  %v1173 = vpop.f32.mrf.mxu0
  %v1174 = vadd.f32 0.0, %v1173
  %1175 = vmatmul.bf16.gmra.mxu0 %v1087
  %v1176 = vpop.f32.mrf.mxu0
  %v1177 = vadd.f32 0.0, %v1176
  %v1178 = vpop.f32.mrf.mxu0
  %v1179 = vadd.f32 0.0, %v1178
  %1180 = vmatmul.bf16.gmra.mxu0 %v1088
  %v1181 = vpop.f32.mrf.mxu0
  %v1182 = vadd.f32 0.0, %v1181
  %v1183 = vpop.f32.mrf.mxu0
  %v1184 = vadd.f32 0.0, %v1183
  %1185 = vmatmul.bf16.gmra.mxu0 %v1089
  %v1186 = vpop.f32.mrf.mxu0
  %v1187 = vadd.f32 0.0, %v1186
  %v1188 = vpop.f32.mrf.mxu0
  %v1189 = vadd.f32 0.0, %v1188
  %1190 = vmatmul.bf16.gmra.mxu0 %v1090
  %v1191 = vpop.f32.mrf.mxu0
  %v1192 = vadd.f32 0.0, %v1191
  %v1193 = vpop.f32.mrf.mxu0
  %v1194 = vadd.f32 0.0, %v1193
  %1195 = vdwg.mxu0
  %v1212 = vunpack.c.l.b16 %v767
  %v1213 = vunpack.c.l.b16 %v769
  %v1214 = vunpack.c.l.b16 %v771
  %v1215 = vunpack.c.l.b16 %v773
  %v1216 = vunpack.c.l.b16 %v775
  %v1217 = vunpack.c.l.b16 %v777
  %v1218 = vunpack.c.l.b16 %v779
  %v1219 = vunpack.c.l.b16 %v781
  %v1220 = vunpack.c.l.b16 %v787
  %v1221 = vunpack.c.l.b16 %v789
  %v1222 = vunpack.c.l.b16 %v791
  %v1223 = vunpack.c.l.b16 %v793
  %v1224 = vunpack.c.l.b16 %v795
  %v1225 = vunpack.c.l.b16 %v797
  %v1226 = vunpack.c.l.b16 %v799
  %v1227 = vunpack.c.l.b16 %v801
  %v1228 = vpack.c.b16 %v1213, %v1212
  %v1229 = vpack.c.b16 %v1215, %v1214
  %v1230 = vpack.c.b16 %v1217, %v1216
  %v1231 = vpack.c.b16 %v1219, %v1218
  %v1232 = vpack.c.b16 %v1221, %v1220
  %v1233 = vpack.c.b16 %v1223, %v1222
  %v1234 = vpack.c.b16 %v1225, %v1224
  %v1235 = vpack.c.b16 %v1227, %v1226
  %v1260 = vunpack.c.l.b16 %v807
  %v1261 = vunpack.c.l.b16 %v808
  %v1262 = vunpack.c.l.b16 %v809
  %v1263 = vunpack.c.l.b16 %v810
  %v1264 = vunpack.c.l.b16 %v811
  %v1265 = vunpack.c.l.b16 %v812
  %v1266 = vunpack.c.l.b16 %v813
  %v1267 = vunpack.c.l.b16 %v814
  %v1268 = vunpack.c.l.b16 %v815
  %v1269 = vunpack.c.l.b16 %v816
  %v1270 = vunpack.c.l.b16 %v817
  %v1271 = vunpack.c.l.b16 %v818
  %v1272 = vunpack.c.l.b16 %v819
  %v1273 = vunpack.c.l.b16 %v820
  %v1274 = vunpack.c.l.b16 %v821
  %v1275 = vunpack.c.l.b16 %v822
  %v1276 = vpack.c.b16 %v1261, %v1260
  %v1277 = vpack.c.b16 %v1263, %v1262
  %v1278 = vpack.c.b16 %v1265, %v1264
  %v1279 = vpack.c.b16 %v1267, %v1266
  %v1280 = vpack.c.b16 %v1269, %v1268
  %v1281 = vpack.c.b16 %v1271, %v1270
  %v1282 = vpack.c.b16 %v1273, %v1272
  %v1283 = vpack.c.b16 %v1275, %v1274
  %1292 = vmatpush.bf16.msra.mxu0 %v1283
  %1293 = vmatpush.bf16.msra.mxu0 %v1282
  %1294 = vmatpush.bf16.msra.mxu0 %v1281
  %1295 = vmatpush.bf16.msra.mxu0 %v1280
  %1296 = vmatpush.bf16.msra.mxu0 %v1279
  %1297 = vmatpush.bf16.msra.mxu0 %v1278
  %1298 = vmatpush.bf16.msra.mxu0 %v1277
  %1299 = vmatpush.bf16.msra.mxu0 %v1276
  %1300 = vmatmul.bf16.gmra.mxu0 %v1228
  %v1301 = vpop.f32.mrf.mxu0
  %v1302 = vadd.f32 %v1157, %v1301
  %v1303 = vpop.f32.mrf.mxu0
  %v1304 = vadd.f32 %v1159, %v1303
  %1305 = vmatmul.bf16.gmra.mxu0 %v1229
  %v1306 = vpop.f32.mrf.mxu0
  %v1307 = vadd.f32 %v1162, %v1306
  %v1308 = vpop.f32.mrf.mxu0
  %v1309 = vadd.f32 %v1164, %v1308
  %1310 = vmatmul.bf16.gmra.mxu0 %v1230
  %v1311 = vpop.f32.mrf.mxu0
  %v1312 = vadd.f32 %v1167, %v1311
  %v1313 = vpop.f32.mrf.mxu0
  %v1314 = vadd.f32 %v1169, %v1313
  %1315 = vmatmul.bf16.gmra.mxu0 %v1231
  %v1316 = vpop.f32.mrf.mxu0
  %v1317 = vadd.f32 %v1172, %v1316
  %v1318 = vpop.f32.mrf.mxu0
  %v1319 = vadd.f32 %v1174, %v1318
  %1320 = vmatmul.bf16.gmra.mxu0 %v1232
  %v1321 = vpop.f32.mrf.mxu0
  %v1322 = vadd.f32 %v1177, %v1321
  %v1323 = vpop.f32.mrf.mxu0
  %v1324 = vadd.f32 %v1179, %v1323
  %1325 = vmatmul.bf16.gmra.mxu0 %v1233
  %v1326 = vpop.f32.mrf.mxu0
  %v1327 = vadd.f32 %v1182, %v1326
  %v1328 = vpop.f32.mrf.mxu0
  %v1329 = vadd.f32 %v1184, %v1328
  %1330 = vmatmul.bf16.gmra.mxu0 %v1234
  %v1331 = vpop.f32.mrf.mxu0
  %v1332 = vadd.f32 %v1187, %v1331
  %v1333 = vpop.f32.mrf.mxu0
  %v1334 = vadd.f32 %v1189, %v1333
  %1335 = vmatmul.bf16.gmra.mxu0 %v1235
  %v1336 = vpop.f32.mrf.mxu0
  %v1337 = vadd.f32 %v1192, %v1336
  %v1338 = vpop.f32.mrf.mxu0
  %v1339 = vadd.f32 %v1194, %v1338
  %1340 = vdwg.mxu0
  %vm1357 = vcmask 1042432
  %vm1358 = vcmask 1046532
  %vm1359 = vmor %vm1357, %vm1358
  %v1360 = vrot.slane %v767, 5
  %v1361 = vrot.slane %v1360, 4
  %v1362 = vrot.slane %v768, 5
  %v1363 = vsel %vm1359, %v1361, %v1362
  %v1364 = vrot.slane %v769, 5
  %v1365 = vrot.slane %v1364, 4
  %v1366 = vrot.slane %v770, 5
  %v1367 = vsel %vm1359, %v1365, %v1366
  %v1368 = vrot.slane %v771, 5
  %v1369 = vrot.slane %v1368, 4
  %v1370 = vrot.slane %v772, 5
  %v1371 = vsel %vm1359, %v1369, %v1370
  %v1372 = vrot.slane %v773, 5
  %v1373 = vrot.slane %v1372, 4
  %v1374 = vrot.slane %v774, 5
  %v1375 = vsel %vm1359, %v1373, %v1374
  %v1376 = vrot.slane %v775, 5
  %v1377 = vrot.slane %v1376, 4
  %v1378 = vrot.slane %v776, 5
  %v1379 = vsel %vm1359, %v1377, %v1378
  %v1380 = vrot.slane %v777, 5
  %v1381 = vrot.slane %v1380, 4
  %v1382 = vrot.slane %v778, 5
  %v1383 = vsel %vm1359, %v1381, %v1382
  %v1384 = vrot.slane %v779, 5
  %v1385 = vrot.slane %v1384, 4
  %v1386 = vrot.slane %v780, 5
  %v1387 = vsel %vm1359, %v1385, %v1386
  %v1388 = vrot.slane %v781, 5
  %v1389 = vrot.slane %v1388, 4
  %v1390 = vrot.slane %v782, 5
  %v1391 = vsel %vm1359, %v1389, %v1390
  %v1392 = vrot.slane %v787, 5
  %v1393 = vrot.slane %v1392, 4
  %v1394 = vrot.slane %v788, 5
  %v1395 = vsel %vm1359, %v1393, %v1394
  %v1396 = vrot.slane %v789, 5
  %v1397 = vrot.slane %v1396, 4
  %v1398 = vrot.slane %v790, 5
  %v1399 = vsel %vm1359, %v1397, %v1398
  %v1400 = vrot.slane %v791, 5
  %v1401 = vrot.slane %v1400, 4
  %v1402 = vrot.slane %v792, 5
  %v1403 = vsel %vm1359, %v1401, %v1402
  %v1404 = vrot.slane %v793, 5
  %v1405 = vrot.slane %v1404, 4
  %v1406 = vrot.slane %v794, 5
  %v1407 = vsel %vm1359, %v1405, %v1406
  %v1408 = vrot.slane %v795, 5
  %v1409 = vrot.slane %v1408, 4
  %v1410 = vrot.slane %v796, 5
  %v1411 = vsel %vm1359, %v1409, %v1410
  %v1412 = vrot.slane %v797, 5
  %v1413 = vrot.slane %v1412, 4
  %v1414 = vrot.slane %v798, 5
  %v1415 = vsel %vm1359, %v1413, %v1414
  %v1416 = vrot.slane %v799, 5
  %v1417 = vrot.slane %v1416, 4
  %v1418 = vrot.slane %v800, 5
  %v1419 = vsel %vm1359, %v1417, %v1418
  %v1420 = vrot.slane %v801, 5
  %v1421 = vrot.slane %v1420, 4
  %v1422 = vrot.slane %v802, 5
  %v1423 = vsel %vm1359, %v1421, %v1422
  %s1424 = scalar_lea.vmem %s4, 128
  %v1425 = vld [vmem:[%s1424] sm:$0xf]
  %v1426 = vld [vmem:[%s1424 + $0x4] sm:$0xf]
  %v1427 = vld [vmem:[%s1424 + $0x8] sm:$0xf]
  %v1428 = vld [vmem:[%s1424 + $0xc] sm:$0xf]
  %v1429 = vld [vmem:[%s1424 + $0x10] sm:$0xf]
  %v1430 = vld [vmem:[%s1424 + $0x14] sm:$0xf]
  %v1431 = vld [vmem:[%s1424 + $0x18] sm:$0xf]
  %v1432 = vld [vmem:[%s1424 + $0x1c] sm:$0xf]
  %v1433 = vld [vmem:[%s1424 + $0x20] sm:$0xf]
  %v1434 = vld [vmem:[%s1424 + $0x24] sm:$0xf]
  %v1435 = vld [vmem:[%s1424 + $0x28] sm:$0xf]
  %v1436 = vld [vmem:[%s1424 + $0x2c] sm:$0xf]
  %v1437 = vld [vmem:[%s1424 + $0x30] sm:$0xf]
  %v1438 = vld [vmem:[%s1424 + $0x34] sm:$0xf]
  %v1439 = vld [vmem:[%s1424 + $0x38] sm:$0xf]
  %v1440 = vld [vmem:[%s1424 + $0x3c] sm:$0xf]
  %v1441 = vunpack.c.l.b16 %v1363
  %v1442 = vunpack.c.l.b16 %v1367
  %v1443 = vunpack.c.l.b16 %v1371
  %v1444 = vunpack.c.l.b16 %v1375
  %v1445 = vunpack.c.l.b16 %v1379
  %v1446 = vunpack.c.l.b16 %v1383
  %v1447 = vunpack.c.l.b16 %v1387
  %v1448 = vunpack.c.l.b16 %v1391
  %v1449 = vunpack.c.l.b16 %v1395
  %v1450 = vunpack.c.l.b16 %v1399
  %v1451 = vunpack.c.l.b16 %v1403
  %v1452 = vunpack.c.l.b16 %v1407
  %v1453 = vunpack.c.l.b16 %v1411
  %v1454 = vunpack.c.l.b16 %v1415
  %v1455 = vunpack.c.l.b16 %v1419
  %v1456 = vunpack.c.l.b16 %v1423
  %v1457 = vpack.c.b16 %v1442, %v1441
  %v1458 = vpack.c.b16 %v1444, %v1443
  %v1459 = vpack.c.b16 %v1446, %v1445
  %v1460 = vpack.c.b16 %v1448, %v1447
  %v1461 = vpack.c.b16 %v1450, %v1449
  %v1462 = vpack.c.b16 %v1452, %v1451
  %v1463 = vpack.c.b16 %v1454, %v1453
  %v1464 = vpack.c.b16 %v1456, %v1455
  %v1489 = vunpack.c.l.b16 %v1425
  %v1490 = vunpack.c.l.b16 %v1426
  %v1491 = vunpack.c.l.b16 %v1427
  %v1492 = vunpack.c.l.b16 %v1428
  %v1493 = vunpack.c.l.b16 %v1429
  %v1494 = vunpack.c.l.b16 %v1430
  %v1495 = vunpack.c.l.b16 %v1431
  %v1496 = vunpack.c.l.b16 %v1432
  %v1497 = vunpack.c.l.b16 %v1433
  %v1498 = vunpack.c.l.b16 %v1434
  %v1499 = vunpack.c.l.b16 %v1435
  %v1500 = vunpack.c.l.b16 %v1436
  %v1501 = vunpack.c.l.b16 %v1437
  %v1502 = vunpack.c.l.b16 %v1438
  %v1503 = vunpack.c.l.b16 %v1439
  %v1504 = vunpack.c.l.b16 %v1440
  %v1505 = vpack.c.b16 %v1490, %v1489
  %v1506 = vpack.c.b16 %v1492, %v1491
  %v1507 = vpack.c.b16 %v1494, %v1493
  %v1508 = vpack.c.b16 %v1496, %v1495
  %v1509 = vpack.c.b16 %v1498, %v1497
  %v1510 = vpack.c.b16 %v1500, %v1499
  %v1511 = vpack.c.b16 %v1502, %v1501
  %v1512 = vpack.c.b16 %v1504, %v1503
  %1521 = vmatpush.bf16.msra.mxu0 %v1512
  %1522 = vmatpush.bf16.msra.mxu0 %v1511
  %1523 = vmatpush.bf16.msra.mxu0 %v1510
  %1524 = vmatpush.bf16.msra.mxu0 %v1509
  %1525 = vmatpush.bf16.msra.mxu0 %v1508
  %1526 = vmatpush.bf16.msra.mxu0 %v1507
  %1527 = vmatpush.bf16.msra.mxu0 %v1506
  %1528 = vmatpush.bf16.msra.mxu0 %v1505
  %1529 = vmatmul.bf16.gmra.mxu0 %v1457
  %v1530 = vpop.f32.mrf.mxu0
  %v1531 = vadd.f32 0.0, %v1530
  %v1532 = vpop.f32.mrf.mxu0
  %v1533 = vadd.f32 0.0, %v1532
  %1534 = vmatmul.bf16.gmra.mxu0 %v1458
  %v1535 = vpop.f32.mrf.mxu0
  %v1536 = vadd.f32 0.0, %v1535
  %v1537 = vpop.f32.mrf.mxu0
  %v1538 = vadd.f32 0.0, %v1537
  %1539 = vmatmul.bf16.gmra.mxu0 %v1459
  %v1540 = vpop.f32.mrf.mxu0
  %v1541 = vadd.f32 0.0, %v1540
  %v1542 = vpop.f32.mrf.mxu0
  %v1543 = vadd.f32 0.0, %v1542
  %1544 = vmatmul.bf16.gmra.mxu0 %v1460
  %v1545 = vpop.f32.mrf.mxu0
  %v1546 = vadd.f32 0.0, %v1545
  %v1547 = vpop.f32.mrf.mxu0
  %v1548 = vadd.f32 0.0, %v1547
  %1549 = vmatmul.bf16.gmra.mxu0 %v1461
  %v1550 = vpop.f32.mrf.mxu0
  %v1551 = vadd.f32 0.0, %v1550
  %v1552 = vpop.f32.mrf.mxu0
  %v1553 = vadd.f32 0.0, %v1552
  %1554 = vmatmul.bf16.gmra.mxu0 %v1462
  %v1555 = vpop.f32.mrf.mxu0
  %v1556 = vadd.f32 0.0, %v1555
  %v1557 = vpop.f32.mrf.mxu0
  %v1558 = vadd.f32 0.0, %v1557
  %1559 = vmatmul.bf16.gmra.mxu0 %v1463
  %v1560 = vpop.f32.mrf.mxu0
  %v1561 = vadd.f32 0.0, %v1560
  %v1562 = vpop.f32.mrf.mxu0
  %v1563 = vadd.f32 0.0, %v1562
  %1564 = vmatmul.bf16.gmra.mxu0 %v1464
  %v1565 = vpop.f32.mrf.mxu0
  %v1566 = vadd.f32 0.0, %v1565
  %v1567 = vpop.f32.mrf.mxu0
  %v1568 = vadd.f32 0.0, %v1567
  %1569 = vdwg.mxu0
  %v1570 = vadd.f32 %v1302, %v1531
  %v1571 = vadd.f32 %v1304, %v1533
  %v1572 = vadd.f32 %v1307, %v1536
  %v1573 = vadd.f32 %v1309, %v1538
  %v1574 = vadd.f32 %v1312, %v1541
  %v1575 = vadd.f32 %v1314, %v1543
  %v1576 = vadd.f32 %v1317, %v1546
  %v1577 = vadd.f32 %v1319, %v1548
  %v1578 = vadd.f32 %v1322, %v1551
  %v1579 = vadd.f32 %v1324, %v1553
  %v1580 = vadd.f32 %v1327, %v1556
  %v1581 = vadd.f32 %v1329, %v1558
  %v1582 = vadd.f32 %v1332, %v1561
  %v1583 = vadd.f32 %v1334, %v1563
  %v1584 = vadd.f32 %v1337, %v1566
  %v1585 = vadd.f32 %v1339, %v1568
  %s1586 = scalar_lea.vmem %s4, 192
  %v1587 = vld [vmem:[%s1586] sm:$0xf]
  %v1588 = vld [vmem:[%s1586 + $0x4] sm:$0xf]
  %v1589 = vld [vmem:[%s1586 + $0x8] sm:$0xf]
  %v1590 = vld [vmem:[%s1586 + $0xc] sm:$0xf]
  %v1591 = vld [vmem:[%s1586 + $0x10] sm:$0xf]
  %v1592 = vld [vmem:[%s1586 + $0x14] sm:$0xf]
  %v1593 = vld [vmem:[%s1586 + $0x18] sm:$0xf]
  %v1594 = vld [vmem:[%s1586 + $0x1c] sm:$0xf]
  %v1595 = vld [vmem:[%s1586 + $0x20] sm:$0xf]
  %v1596 = vld [vmem:[%s1586 + $0x24] sm:$0xf]
  %v1597 = vld [vmem:[%s1586 + $0x28] sm:$0xf]
  %v1598 = vld [vmem:[%s1586 + $0x2c] sm:$0xf]
  %v1599 = vld [vmem:[%s1586 + $0x30] sm:$0xf]
  %v1600 = vld [vmem:[%s1586 + $0x34] sm:$0xf]
  %v1601 = vld [vmem:[%s1586 + $0x38] sm:$0xf]
  %v1602 = vld [vmem:[%s1586 + $0x3c] sm:$0xf]
  %v1605 = vunpack.c.l.b16 %v783
  %v1606 = vunpack.c.l.b16 %v803
  %v1607 = vpack.c.b16 %v1214, %v1213
  %v1608 = vpack.c.b16 %v1216, %v1215
  %v1609 = vpack.c.b16 %v1218, %v1217
  %v1610 = vpack.c.b16 %v1605, %v1219
  %v1611 = vpack.c.b16 %v1222, %v1221
  %v1612 = vpack.c.b16 %v1224, %v1223
  %v1613 = vpack.c.b16 %v1226, %v1225
  %v1614 = vpack.c.b16 %v1606, %v1227
  %v1639 = vunpack.c.l.b16 %v1587
  %v1640 = vunpack.c.l.b16 %v1588
  %v1641 = vunpack.c.l.b16 %v1589
  %v1642 = vunpack.c.l.b16 %v1590
  %v1643 = vunpack.c.l.b16 %v1591
  %v1644 = vunpack.c.l.b16 %v1592
  %v1645 = vunpack.c.l.b16 %v1593
  %v1646 = vunpack.c.l.b16 %v1594
  %v1647 = vunpack.c.l.b16 %v1595
  %v1648 = vunpack.c.l.b16 %v1596
  %v1649 = vunpack.c.l.b16 %v1597
  %v1650 = vunpack.c.l.b16 %v1598
  %v1651 = vunpack.c.l.b16 %v1599
  %v1652 = vunpack.c.l.b16 %v1600
  %v1653 = vunpack.c.l.b16 %v1601
  %v1654 = vunpack.c.l.b16 %v1602
  %v1655 = vpack.c.b16 %v1640, %v1639
  %v1656 = vpack.c.b16 %v1642, %v1641
  %v1657 = vpack.c.b16 %v1644, %v1643
  %v1658 = vpack.c.b16 %v1646, %v1645
  %v1659 = vpack.c.b16 %v1648, %v1647
  %v1660 = vpack.c.b16 %v1650, %v1649
  %v1661 = vpack.c.b16 %v1652, %v1651
  %v1662 = vpack.c.b16 %v1654, %v1653
  %1671 = vmatpush.bf16.msra.mxu0 %v1662
  %1672 = vmatpush.bf16.msra.mxu0 %v1661
  %1673 = vmatpush.bf16.msra.mxu0 %v1660
  %1674 = vmatpush.bf16.msra.mxu0 %v1659
  %1675 = vmatpush.bf16.msra.mxu0 %v1658
  %1676 = vmatpush.bf16.msra.mxu0 %v1657
  %1677 = vmatpush.bf16.msra.mxu0 %v1656
  %1678 = vmatpush.bf16.msra.mxu0 %v1655
  %1679 = vmatmul.bf16.gmra.mxu0 %v1607
  %v1680 = vpop.f32.mrf.mxu0
  %v1681 = vadd.f32 0.0, %v1680
  %v1682 = vpop.f32.mrf.mxu0
  %v1683 = vadd.f32 0.0, %v1682
  %1684 = vmatmul.bf16.gmra.mxu0 %v1608
  %v1685 = vpop.f32.mrf.mxu0
  %v1686 = vadd.f32 0.0, %v1685
  %v1687 = vpop.f32.mrf.mxu0
  %v1688 = vadd.f32 0.0, %v1687
  %1689 = vmatmul.bf16.gmra.mxu0 %v1609
  %v1690 = vpop.f32.mrf.mxu0
  %v1691 = vadd.f32 0.0, %v1690
  %v1692 = vpop.f32.mrf.mxu0
  %v1693 = vadd.f32 0.0, %v1692
  %1694 = vmatmul.bf16.gmra.mxu0 %v1610
  %v1695 = vpop.f32.mrf.mxu0
  %v1696 = vadd.f32 0.0, %v1695
  %v1697 = vpop.f32.mrf.mxu0
  %v1698 = vadd.f32 0.0, %v1697
  %1699 = vmatmul.bf16.gmra.mxu0 %v1611
  %v1700 = vpop.f32.mrf.mxu0
  %v1701 = vadd.f32 0.0, %v1700
  %v1702 = vpop.f32.mrf.mxu0
  %v1703 = vadd.f32 0.0, %v1702
  %1704 = vmatmul.bf16.gmra.mxu0 %v1612
  %v1705 = vpop.f32.mrf.mxu0
  %v1706 = vadd.f32 0.0, %v1705
  %v1707 = vpop.f32.mrf.mxu0
  %v1708 = vadd.f32 0.0, %v1707
  %1709 = vmatmul.bf16.gmra.mxu0 %v1613
  %v1710 = vpop.f32.mrf.mxu0
  %v1711 = vadd.f32 0.0, %v1710
  %v1712 = vpop.f32.mrf.mxu0
  %v1713 = vadd.f32 0.0, %v1712
  %1714 = vmatmul.bf16.gmra.mxu0 %v1614
  %v1715 = vpop.f32.mrf.mxu0
  %v1716 = vadd.f32 0.0, %v1715
  %v1717 = vpop.f32.mrf.mxu0
  %v1718 = vadd.f32 0.0, %v1717
  %1719 = vdwg.mxu0
  %v1720 = vadd.f32 %v1570, %v1681
  %v1721 = vadd.f32 %v1571, %v1683
  %v1722 = vadd.f32 %v1572, %v1686
  %v1723 = vadd.f32 %v1573, %v1688
  %v1724 = vadd.f32 %v1574, %v1691
  %v1725 = vadd.f32 %v1575, %v1693
  %v1726 = vadd.f32 %v1576, %v1696
  %v1727 = vadd.f32 %v1577, %v1698
  %v1728 = vadd.f32 %v1578, %v1701
  %v1729 = vadd.f32 %v1579, %v1703
  %v1730 = vadd.f32 %v1580, %v1706
  %v1731 = vadd.f32 %v1581, %v1708
  %v1732 = vadd.f32 %v1582, %v1711
  %v1733 = vadd.f32 %v1583, %v1713
  %v1734 = vadd.f32 %v1584, %v1716
  %v1735 = vadd.f32 %v1585, %v1718
  %v1737 = vshrl.u32 %v783, 16
  %v1739 = vrot.slane %v1737, 4
  %v1740 = vshll.u32 %v783, 16
  %v1742 = vrot.slane %v1740, 5
  %v1743 = vor.u32 %v1739, %v1742
  %v1744 = vrot.slane %v1743, 4
  %v1746 = vshll.u32 %v784, 16
  %v1748 = vrot.slane %v1746, 5
  %v1749 = vsel %vm825, %v1744, %v1748
  %v1751 = vshrl.u32 %v803, 16
  %v1753 = vrot.slane %v1751, 4
  %v1754 = vshll.u32 %v803, 16
  %v1756 = vrot.slane %v1754, 5
  %v1757 = vor.u32 %v1753, %v1756
  %v1758 = vrot.slane %v1757, 4
  %v1760 = vshll.u32 %v804, 16
  %v1762 = vrot.slane %v1760, 5
  %v1763 = vsel %vm825, %v1758, %v1762
  %s1764 = scalar_lea.vmem %s4, 256
  %v1765 = vld [vmem:[%s1764] sm:$0xf]
  %v1766 = vld [vmem:[%s1764 + $0x4] sm:$0xf]
  %v1767 = vld [vmem:[%s1764 + $0x8] sm:$0xf]
  %v1768 = vld [vmem:[%s1764 + $0xc] sm:$0xf]
  %v1769 = vld [vmem:[%s1764 + $0x10] sm:$0xf]
  %v1770 = vld [vmem:[%s1764 + $0x14] sm:$0xf]
  %v1771 = vld [vmem:[%s1764 + $0x18] sm:$0xf]
  %v1772 = vld [vmem:[%s1764 + $0x1c] sm:$0xf]
  %v1773 = vld [vmem:[%s1764 + $0x20] sm:$0xf]
  %v1774 = vld [vmem:[%s1764 + $0x24] sm:$0xf]
  %v1775 = vld [vmem:[%s1764 + $0x28] sm:$0xf]
  %v1776 = vld [vmem:[%s1764 + $0x2c] sm:$0xf]
  %v1777 = vld [vmem:[%s1764 + $0x30] sm:$0xf]
  %v1778 = vld [vmem:[%s1764 + $0x34] sm:$0xf]
  %v1779 = vld [vmem:[%s1764 + $0x38] sm:$0xf]
  %v1780 = vld [vmem:[%s1764 + $0x3c] sm:$0xf]
  %v1781 = vunpack.c.l.b16 %v1749
  %v1782 = vunpack.c.l.b16 %v1763
  %v1783 = vpack.c.b16 %v1069, %v1068
  %v1784 = vpack.c.b16 %v1071, %v1070
  %v1785 = vpack.c.b16 %v1073, %v1072
  %v1786 = vpack.c.b16 %v1781, %v1074
  %v1787 = vpack.c.b16 %v1077, %v1076
  %v1788 = vpack.c.b16 %v1079, %v1078
  %v1789 = vpack.c.b16 %v1081, %v1080
  %v1790 = vpack.c.b16 %v1782, %v1082
  %v1815 = vunpack.c.l.b16 %v1765
  %v1816 = vunpack.c.l.b16 %v1766
  %v1817 = vunpack.c.l.b16 %v1767
  %v1818 = vunpack.c.l.b16 %v1768
  %v1819 = vunpack.c.l.b16 %v1769
  %v1820 = vunpack.c.l.b16 %v1770
  %v1821 = vunpack.c.l.b16 %v1771
  %v1822 = vunpack.c.l.b16 %v1772
  %v1823 = vunpack.c.l.b16 %v1773
  %v1824 = vunpack.c.l.b16 %v1774
  %v1825 = vunpack.c.l.b16 %v1775
  %v1826 = vunpack.c.l.b16 %v1776
  %v1827 = vunpack.c.l.b16 %v1777
  %v1828 = vunpack.c.l.b16 %v1778
  %v1829 = vunpack.c.l.b16 %v1779
  %v1830 = vunpack.c.l.b16 %v1780
  %v1831 = vpack.c.b16 %v1816, %v1815
  %v1832 = vpack.c.b16 %v1818, %v1817
  %v1833 = vpack.c.b16 %v1820, %v1819
  %v1834 = vpack.c.b16 %v1822, %v1821
  %v1835 = vpack.c.b16 %v1824, %v1823
  %v1836 = vpack.c.b16 %v1826, %v1825
  %v1837 = vpack.c.b16 %v1828, %v1827
  %v1838 = vpack.c.b16 %v1830, %v1829
  %1847 = vmatpush.bf16.msra.mxu0 %v1838
  %1848 = vmatpush.bf16.msra.mxu0 %v1837
  %1849 = vmatpush.bf16.msra.mxu0 %v1836
  %1850 = vmatpush.bf16.msra.mxu0 %v1835
  %1851 = vmatpush.bf16.msra.mxu0 %v1834
  %1852 = vmatpush.bf16.msra.mxu0 %v1833
  %1853 = vmatpush.bf16.msra.mxu0 %v1832
  %1854 = vmatpush.bf16.msra.mxu0 %v1831
  %1855 = vmatmul.bf16.gmra.mxu0 %v1783
  %v1856 = vpop.f32.mrf.mxu0
  %v1857 = vadd.f32 0.0, %v1856
  %v1858 = vpop.f32.mrf.mxu0
  %v1859 = vadd.f32 0.0, %v1858
  %1860 = vmatmul.bf16.gmra.mxu0 %v1784
  %v1861 = vpop.f32.mrf.mxu0
  %v1862 = vadd.f32 0.0, %v1861
  %v1863 = vpop.f32.mrf.mxu0
  %v1864 = vadd.f32 0.0, %v1863
  %1865 = vmatmul.bf16.gmra.mxu0 %v1785
  %v1866 = vpop.f32.mrf.mxu0
  %v1867 = vadd.f32 0.0, %v1866
  %v1868 = vpop.f32.mrf.mxu0
  %v1869 = vadd.f32 0.0, %v1868
  %1870 = vmatmul.bf16.gmra.mxu0 %v1786
  %v1871 = vpop.f32.mrf.mxu0
  %v1872 = vadd.f32 0.0, %v1871
  %v1873 = vpop.f32.mrf.mxu0
  %v1874 = vadd.f32 0.0, %v1873
  %1875 = vmatmul.bf16.gmra.mxu0 %v1787
  %v1876 = vpop.f32.mrf.mxu0
  %v1877 = vadd.f32 0.0, %v1876
  %v1878 = vpop.f32.mrf.mxu0
  %v1879 = vadd.f32 0.0, %v1878
  %1880 = vmatmul.bf16.gmra.mxu0 %v1788
  %v1881 = vpop.f32.mrf.mxu0
  %v1882 = vadd.f32 0.0, %v1881
  %v1883 = vpop.f32.mrf.mxu0
  %v1884 = vadd.f32 0.0, %v1883
  %1885 = vmatmul.bf16.gmra.mxu0 %v1789
  %v1886 = vpop.f32.mrf.mxu0
  %v1887 = vadd.f32 0.0, %v1886
  %v1888 = vpop.f32.mrf.mxu0
  %v1889 = vadd.f32 0.0, %v1888
  %1890 = vmatmul.bf16.gmra.mxu0 %v1790
  %v1891 = vpop.f32.mrf.mxu0
  %v1892 = vadd.f32 0.0, %v1891
  %v1893 = vpop.f32.mrf.mxu0
  %v1894 = vadd.f32 0.0, %v1893
  %1895 = vdwg.mxu0
  %v1896 = vadd.f32 %v1720, %v1857
  %v1897 = vadd.f32 %v1721, %v1859
  %v1898 = vadd.f32 %v1722, %v1862
  %v1899 = vadd.f32 %v1723, %v1864
  %v1900 = vadd.f32 %v1724, %v1867
  %v1901 = vadd.f32 %v1725, %v1869
  %v1902 = vadd.f32 %v1726, %v1872
  %v1903 = vadd.f32 %v1727, %v1874
  %v1904 = vadd.f32 %v1728, %v1877
  %v1905 = vadd.f32 %v1729, %v1879
  %v1906 = vadd.f32 %v1730, %v1882
  %v1907 = vadd.f32 %v1731, %v1884
  %v1908 = vadd.f32 %v1732, %v1887
  %v1909 = vadd.f32 %v1733, %v1889
  %v1910 = vadd.f32 %v1734, %v1892
  %v1911 = vadd.f32 %v1735, %v1894
  %v1914 = vrot.slane %v783, 5
  %v1915 = vrot.slane %v1914, 4
  %v1916 = vrot.slane %v784, 5
  %v1917 = vsel %vm1359, %v1915, %v1916
  %v1918 = vrot.slane %v803, 5
  %v1919 = vrot.slane %v1918, 4
  %v1920 = vrot.slane %v804, 5
  %v1921 = vsel %vm1359, %v1919, %v1920
  %s1922 = scalar_lea.vmem %s4, 320
  %v1923 = vld [vmem:[%s1922] sm:$0xf]
  %v1924 = vld [vmem:[%s1922 + $0x4] sm:$0xf]
  %v1925 = vld [vmem:[%s1922 + $0x8] sm:$0xf]
  %v1926 = vld [vmem:[%s1922 + $0xc] sm:$0xf]
  %v1927 = vld [vmem:[%s1922 + $0x10] sm:$0xf]
  %v1928 = vld [vmem:[%s1922 + $0x14] sm:$0xf]
  %v1929 = vld [vmem:[%s1922 + $0x18] sm:$0xf]
  %v1930 = vld [vmem:[%s1922 + $0x1c] sm:$0xf]
  %v1931 = vld [vmem:[%s1922 + $0x20] sm:$0xf]
  %v1932 = vld [vmem:[%s1922 + $0x24] sm:$0xf]
  %v1933 = vld [vmem:[%s1922 + $0x28] sm:$0xf]
  %v1934 = vld [vmem:[%s1922 + $0x2c] sm:$0xf]
  %v1935 = vld [vmem:[%s1922 + $0x30] sm:$0xf]
  %v1936 = vld [vmem:[%s1922 + $0x34] sm:$0xf]
  %v1937 = vld [vmem:[%s1922 + $0x38] sm:$0xf]
  %v1938 = vld [vmem:[%s1922 + $0x3c] sm:$0xf]
  %v1939 = vunpack.c.l.b16 %v1917
  %v1940 = vunpack.c.l.b16 %v1921
  %v1941 = vpack.c.b16 %v1443, %v1442
  %v1942 = vpack.c.b16 %v1445, %v1444
  %v1943 = vpack.c.b16 %v1447, %v1446
  %v1944 = vpack.c.b16 %v1939, %v1448
  %v1945 = vpack.c.b16 %v1451, %v1450
  %v1946 = vpack.c.b16 %v1453, %v1452
  %v1947 = vpack.c.b16 %v1455, %v1454
  %v1948 = vpack.c.b16 %v1940, %v1456
  %v1973 = vunpack.c.l.b16 %v1923
  %v1974 = vunpack.c.l.b16 %v1924
  %v1975 = vunpack.c.l.b16 %v1925
  %v1976 = vunpack.c.l.b16 %v1926
  %v1977 = vunpack.c.l.b16 %v1927
  %v1978 = vunpack.c.l.b16 %v1928
  %v1979 = vunpack.c.l.b16 %v1929
  %v1980 = vunpack.c.l.b16 %v1930
  %v1981 = vunpack.c.l.b16 %v1931
  %v1982 = vunpack.c.l.b16 %v1932
  %v1983 = vunpack.c.l.b16 %v1933
  %v1984 = vunpack.c.l.b16 %v1934
  %v1985 = vunpack.c.l.b16 %v1935
  %v1986 = vunpack.c.l.b16 %v1936
  %v1987 = vunpack.c.l.b16 %v1937
  %v1988 = vunpack.c.l.b16 %v1938
  %v1989 = vpack.c.b16 %v1974, %v1973
  %v1990 = vpack.c.b16 %v1976, %v1975
  %v1991 = vpack.c.b16 %v1978, %v1977
  %v1992 = vpack.c.b16 %v1980, %v1979
  %v1993 = vpack.c.b16 %v1982, %v1981
  %v1994 = vpack.c.b16 %v1984, %v1983
  %v1995 = vpack.c.b16 %v1986, %v1985
  %v1996 = vpack.c.b16 %v1988, %v1987
  %2005 = vmatpush.bf16.msra.mxu0 %v1996
  %2006 = vmatpush.bf16.msra.mxu0 %v1995
  %2007 = vmatpush.bf16.msra.mxu0 %v1994
  %2008 = vmatpush.bf16.msra.mxu0 %v1993
  %2009 = vmatpush.bf16.msra.mxu0 %v1992
  %2010 = vmatpush.bf16.msra.mxu0 %v1991
  %2011 = vmatpush.bf16.msra.mxu0 %v1990
  %2012 = vmatpush.bf16.msra.mxu0 %v1989
  %2013 = vmatmul.bf16.gmra.mxu0 %v1941
  %v2014 = vpop.f32.mrf.mxu0
  %v2015 = vadd.f32 0.0, %v2014
  %v2016 = vpop.f32.mrf.mxu0
  %v2017 = vadd.f32 0.0, %v2016
  %2018 = vmatmul.bf16.gmra.mxu0 %v1942
  %v2019 = vpop.f32.mrf.mxu0
  %v2020 = vadd.f32 0.0, %v2019
  %v2021 = vpop.f32.mrf.mxu0
  %v2022 = vadd.f32 0.0, %v2021
  %2023 = vmatmul.bf16.gmra.mxu0 %v1943
  %v2024 = vpop.f32.mrf.mxu0
  %v2025 = vadd.f32 0.0, %v2024
  %v2026 = vpop.f32.mrf.mxu0
  %v2027 = vadd.f32 0.0, %v2026
  %2028 = vmatmul.bf16.gmra.mxu0 %v1944
  %v2029 = vpop.f32.mrf.mxu0
  %v2030 = vadd.f32 0.0, %v2029
  %v2031 = vpop.f32.mrf.mxu0
  %v2032 = vadd.f32 0.0, %v2031
  %2033 = vmatmul.bf16.gmra.mxu0 %v1945
  %v2034 = vpop.f32.mrf.mxu0
  %v2035 = vadd.f32 0.0, %v2034
  %v2036 = vpop.f32.mrf.mxu0
  %v2037 = vadd.f32 0.0, %v2036
  %2038 = vmatmul.bf16.gmra.mxu0 %v1946
  %v2039 = vpop.f32.mrf.mxu0
  %v2040 = vadd.f32 0.0, %v2039
  %v2041 = vpop.f32.mrf.mxu0
  %v2042 = vadd.f32 0.0, %v2041
  %2043 = vmatmul.bf16.gmra.mxu0 %v1947
  %v2044 = vpop.f32.mrf.mxu0
  %v2045 = vadd.f32 0.0, %v2044
  %v2046 = vpop.f32.mrf.mxu0
  %v2047 = vadd.f32 0.0, %v2046
  %2048 = vmatmul.bf16.gmra.mxu0 %v1948
  %v2049 = vpop.f32.mrf.mxu0
  %v2050 = vadd.f32 0.0, %v2049
  %v2051 = vpop.f32.mrf.mxu0
  %v2052 = vadd.f32 0.0, %v2051
  %2053 = vdwg.mxu0
  %v2054 = vadd.f32 %v1896, %v2015
  %v2055 = vadd.f32 %v1897, %v2017
  %v2056 = vadd.f32 %v1898, %v2020
  %v2057 = vadd.f32 %v1899, %v2022
  %v2058 = vadd.f32 %v1900, %v2025
  %v2059 = vadd.f32 %v1901, %v2027
  %v2060 = vadd.f32 %v1902, %v2030
  %v2061 = vadd.f32 %v1903, %v2032
  %v2062 = vadd.f32 %v1904, %v2035
  %v2063 = vadd.f32 %v1905, %v2037
  %v2064 = vadd.f32 %v1906, %v2040
  %v2065 = vadd.f32 %v1907, %v2042
  %v2066 = vadd.f32 %v1908, %v2045
  %v2067 = vadd.f32 %v1909, %v2047
  %v2068 = vadd.f32 %v1910, %v2050
  %v2069 = vadd.f32 %v1911, %v2052
  %s2070 = scalar_lea.vmem %s4, 384
  %v2071 = vld [vmem:[%s2070] sm:$0xf]
  %v2072 = vld [vmem:[%s2070 + $0x4] sm:$0xf]
  %v2073 = vld [vmem:[%s2070 + $0x8] sm:$0xf]
  %v2074 = vld [vmem:[%s2070 + $0xc] sm:$0xf]
  %v2075 = vld [vmem:[%s2070 + $0x10] sm:$0xf]
  %v2076 = vld [vmem:[%s2070 + $0x14] sm:$0xf]
  %v2077 = vld [vmem:[%s2070 + $0x18] sm:$0xf]
  %v2078 = vld [vmem:[%s2070 + $0x1c] sm:$0xf]
  %v2079 = vld [vmem:[%s2070 + $0x20] sm:$0xf]
  %v2080 = vld [vmem:[%s2070 + $0x24] sm:$0xf]
  %v2081 = vld [vmem:[%s2070 + $0x28] sm:$0xf]
  %v2082 = vld [vmem:[%s2070 + $0x2c] sm:$0xf]
  %v2083 = vld [vmem:[%s2070 + $0x30] sm:$0xf]
  %v2084 = vld [vmem:[%s2070 + $0x34] sm:$0xf]
  %v2085 = vld [vmem:[%s2070 + $0x38] sm:$0xf]
  %v2086 = vld [vmem:[%s2070 + $0x3c] sm:$0xf]
  %v2089 = vunpack.c.l.b16 %v785
  %v2090 = vunpack.c.l.b16 %v805
  %v2091 = vpack.c.b16 %v2089, %v1605
  %v2092 = vpack.c.b16 %v2090, %v1606
  %v2111 = vunpack.c.l.b16 %v2071
  %v2112 = vunpack.c.l.b16 %v2072
  %v2113 = vunpack.c.l.b16 %v2073
  %v2114 = vunpack.c.l.b16 %v2074
  %v2115 = vunpack.c.l.b16 %v2075
  %v2116 = vunpack.c.l.b16 %v2076
  %v2117 = vunpack.c.l.b16 %v2077
  %v2118 = vunpack.c.l.b16 %v2078
  %v2119 = vunpack.c.l.b16 %v2079
  %v2120 = vunpack.c.l.b16 %v2080
  %v2121 = vunpack.c.l.b16 %v2081
  %v2122 = vunpack.c.l.b16 %v2082
  %v2123 = vunpack.c.l.b16 %v2083
  %v2124 = vunpack.c.l.b16 %v2084
  %v2125 = vunpack.c.l.b16 %v2085
  %v2126 = vunpack.c.l.b16 %v2086
  %v2127 = vpack.c.b16 %v2112, %v2111
  %v2128 = vpack.c.b16 %v2114, %v2113
  %v2129 = vpack.c.b16 %v2116, %v2115
  %v2130 = vpack.c.b16 %v2118, %v2117
  %v2131 = vpack.c.b16 %v2120, %v2119
  %v2132 = vpack.c.b16 %v2122, %v2121
  %v2133 = vpack.c.b16 %v2124, %v2123
  %v2134 = vpack.c.b16 %v2126, %v2125
  %2143 = vmatpush.bf16.msra.mxu0 %v2134
  %2144 = vmatpush.bf16.msra.mxu0 %v2133
  %2145 = vmatpush.bf16.msra.mxu0 %v2132
  %2146 = vmatpush.bf16.msra.mxu0 %v2131
  %2147 = vmatpush.bf16.msra.mxu0 %v2130
  %2148 = vmatpush.bf16.msra.mxu0 %v2129
  %2149 = vmatpush.bf16.msra.mxu0 %v2128
  %2150 = vmatpush.bf16.msra.mxu0 %v2127
  %2151 = vmatmul.bf16.gmra.mxu0 %v1229
  %v2152 = vpop.f32.mrf.mxu0
  %v2153 = vadd.f32 0.0, %v2152
  %v2154 = vpop.f32.mrf.mxu0
  %v2155 = vadd.f32 0.0, %v2154
  %2156 = vmatmul.bf16.gmra.mxu0 %v1230
  %v2157 = vpop.f32.mrf.mxu0
  %v2158 = vadd.f32 0.0, %v2157
  %v2159 = vpop.f32.mrf.mxu0
  %v2160 = vadd.f32 0.0, %v2159
  %2161 = vmatmul.bf16.gmra.mxu0 %v1231
  %v2162 = vpop.f32.mrf.mxu0
  %v2163 = vadd.f32 0.0, %v2162
  %v2164 = vpop.f32.mrf.mxu0
  %v2165 = vadd.f32 0.0, %v2164
  %2166 = vmatmul.bf16.gmra.mxu0 %v2091
  %v2167 = vpop.f32.mrf.mxu0
  %v2168 = vadd.f32 0.0, %v2167
  %v2169 = vpop.f32.mrf.mxu0
  %v2170 = vadd.f32 0.0, %v2169
  %2171 = vmatmul.bf16.gmra.mxu0 %v1233
  %v2172 = vpop.f32.mrf.mxu0
  %v2173 = vadd.f32 0.0, %v2172
  %v2174 = vpop.f32.mrf.mxu0
  %v2175 = vadd.f32 0.0, %v2174
  %2176 = vmatmul.bf16.gmra.mxu0 %v1234
  %v2177 = vpop.f32.mrf.mxu0
  %v2178 = vadd.f32 0.0, %v2177
  %v2179 = vpop.f32.mrf.mxu0
  %v2180 = vadd.f32 0.0, %v2179
  %2181 = vmatmul.bf16.gmra.mxu0 %v1235
  %v2182 = vpop.f32.mrf.mxu0
  %v2183 = vadd.f32 0.0, %v2182
  %v2184 = vpop.f32.mrf.mxu0
  %v2185 = vadd.f32 0.0, %v2184
  %2186 = vmatmul.bf16.gmra.mxu0 %v2092
  %v2187 = vpop.f32.mrf.mxu0
  %v2188 = vadd.f32 0.0, %v2187
  %v2189 = vpop.f32.mrf.mxu0
  %v2190 = vadd.f32 0.0, %v2189
  %2191 = vdwg.mxu0
  %v2192 = vadd.f32 %v2054, %v2153
  %v2193 = vadd.f32 %v2055, %v2155
  %v2194 = vadd.f32 %v2056, %v2158
  %v2195 = vadd.f32 %v2057, %v2160
  %v2196 = vadd.f32 %v2058, %v2163
  %v2197 = vadd.f32 %v2059, %v2165
  %v2198 = vadd.f32 %v2060, %v2168
  %v2199 = vadd.f32 %v2061, %v2170
  %v2200 = vadd.f32 %v2062, %v2173
  %v2201 = vadd.f32 %v2063, %v2175
  %v2202 = vadd.f32 %v2064, %v2178
  %v2203 = vadd.f32 %v2065, %v2180
  %v2204 = vadd.f32 %v2066, %v2183
  %v2205 = vadd.f32 %v2067, %v2185
  %v2206 = vadd.f32 %v2068, %v2188
  %v2207 = vadd.f32 %v2069, %v2190
  %v2209 = vshrl.u32 %v785, 16
  %v2211 = vrot.slane %v2209, 4
  %v2212 = vshll.u32 %v785, 16
  %v2214 = vrot.slane %v2212, 5
  %v2215 = vor.u32 %v2211, %v2214
  %v2216 = vrot.slane %v2215, 4
  %v2218 = vshll.u32 %v786, 16
  %v2220 = vrot.slane %v2218, 5
  %v2221 = vsel %vm825, %v2216, %v2220
  %v2223 = vshrl.u32 %v805, 16
  %v2225 = vrot.slane %v2223, 4
  %v2226 = vshll.u32 %v805, 16
  %v2228 = vrot.slane %v2226, 5
  %v2229 = vor.u32 %v2225, %v2228
  %v2230 = vrot.slane %v2229, 4
  %v2232 = vshll.u32 %v806, 16
  %v2234 = vrot.slane %v2232, 5
  %v2235 = vsel %vm825, %v2230, %v2234
  %s2236 = scalar_lea.vmem %s4, 448
  %v2237 = vld [vmem:[%s2236] sm:$0xf]
  %v2238 = vld [vmem:[%s2236 + $0x4] sm:$0xf]
  %v2239 = vld [vmem:[%s2236 + $0x8] sm:$0xf]
  %v2240 = vld [vmem:[%s2236 + $0xc] sm:$0xf]
  %v2241 = vld [vmem:[%s2236 + $0x10] sm:$0xf]
  %v2242 = vld [vmem:[%s2236 + $0x14] sm:$0xf]
  %v2243 = vld [vmem:[%s2236 + $0x18] sm:$0xf]
  %v2244 = vld [vmem:[%s2236 + $0x1c] sm:$0xf]
  %v2245 = vld [vmem:[%s2236 + $0x20] sm:$0xf]
  %v2246 = vld [vmem:[%s2236 + $0x24] sm:$0xf]
  %v2247 = vld [vmem:[%s2236 + $0x28] sm:$0xf]
  %v2248 = vld [vmem:[%s2236 + $0x2c] sm:$0xf]
  %v2249 = vld [vmem:[%s2236 + $0x30] sm:$0xf]
  %v2250 = vld [vmem:[%s2236 + $0x34] sm:$0xf]
  %v2251 = vld [vmem:[%s2236 + $0x38] sm:$0xf]
  %v2252 = vld [vmem:[%s2236 + $0x3c] sm:$0xf]
  %v2253 = vunpack.c.l.b16 %v2221
  %v2254 = vunpack.c.l.b16 %v2235
  %v2255 = vpack.c.b16 %v2253, %v1781
  %v2256 = vpack.c.b16 %v2254, %v1782
  %v2275 = vunpack.c.l.b16 %v2237
  %v2276 = vunpack.c.l.b16 %v2238
  %v2277 = vunpack.c.l.b16 %v2239
  %v2278 = vunpack.c.l.b16 %v2240
  %v2279 = vunpack.c.l.b16 %v2241
  %v2280 = vunpack.c.l.b16 %v2242
  %v2281 = vunpack.c.l.b16 %v2243
  %v2282 = vunpack.c.l.b16 %v2244
  %v2283 = vunpack.c.l.b16 %v2245
  %v2284 = vunpack.c.l.b16 %v2246
  %v2285 = vunpack.c.l.b16 %v2247
  %v2286 = vunpack.c.l.b16 %v2248
  %v2287 = vunpack.c.l.b16 %v2249
  %v2288 = vunpack.c.l.b16 %v2250
  %v2289 = vunpack.c.l.b16 %v2251
  %v2290 = vunpack.c.l.b16 %v2252
  %v2291 = vpack.c.b16 %v2276, %v2275
  %v2292 = vpack.c.b16 %v2278, %v2277
  %v2293 = vpack.c.b16 %v2280, %v2279
  %v2294 = vpack.c.b16 %v2282, %v2281
  %v2295 = vpack.c.b16 %v2284, %v2283
  %v2296 = vpack.c.b16 %v2286, %v2285
  %v2297 = vpack.c.b16 %v2288, %v2287
  %v2298 = vpack.c.b16 %v2290, %v2289
  %2307 = vmatpush.bf16.msra.mxu0 %v2298
  %2308 = vmatpush.bf16.msra.mxu0 %v2297
  %2309 = vmatpush.bf16.msra.mxu0 %v2296
  %2310 = vmatpush.bf16.msra.mxu0 %v2295
  %2311 = vmatpush.bf16.msra.mxu0 %v2294
  %2312 = vmatpush.bf16.msra.mxu0 %v2293
  %2313 = vmatpush.bf16.msra.mxu0 %v2292
  %2314 = vmatpush.bf16.msra.mxu0 %v2291
  %2315 = vmatmul.bf16.gmra.mxu0 %v1084
  %v2316 = vpop.f32.mrf.mxu0
  %v2317 = vadd.f32 0.0, %v2316
  %v2318 = vpop.f32.mrf.mxu0
  %v2319 = vadd.f32 0.0, %v2318
  %2320 = vmatmul.bf16.gmra.mxu0 %v1085
  %v2321 = vpop.f32.mrf.mxu0
  %v2322 = vadd.f32 0.0, %v2321
  %v2323 = vpop.f32.mrf.mxu0
  %v2324 = vadd.f32 0.0, %v2323
  %2325 = vmatmul.bf16.gmra.mxu0 %v1086
  %v2326 = vpop.f32.mrf.mxu0
  %v2327 = vadd.f32 0.0, %v2326
  %v2328 = vpop.f32.mrf.mxu0
  %v2329 = vadd.f32 0.0, %v2328
  %2330 = vmatmul.bf16.gmra.mxu0 %v2255
  %v2331 = vpop.f32.mrf.mxu0
  %v2332 = vadd.f32 0.0, %v2331
  %v2333 = vpop.f32.mrf.mxu0
  %v2334 = vadd.f32 0.0, %v2333
  %2335 = vmatmul.bf16.gmra.mxu0 %v1088
  %v2336 = vpop.f32.mrf.mxu0
  %v2337 = vadd.f32 0.0, %v2336
  %v2338 = vpop.f32.mrf.mxu0
  %v2339 = vadd.f32 0.0, %v2338
  %2340 = vmatmul.bf16.gmra.mxu0 %v1089
  %v2341 = vpop.f32.mrf.mxu0
  %v2342 = vadd.f32 0.0, %v2341
  %v2343 = vpop.f32.mrf.mxu0
  %v2344 = vadd.f32 0.0, %v2343
  %2345 = vmatmul.bf16.gmra.mxu0 %v1090
  %v2346 = vpop.f32.mrf.mxu0
  %v2347 = vadd.f32 0.0, %v2346
  %v2348 = vpop.f32.mrf.mxu0
  %v2349 = vadd.f32 0.0, %v2348
  %2350 = vmatmul.bf16.gmra.mxu0 %v2256
  %v2351 = vpop.f32.mrf.mxu0
  %v2352 = vadd.f32 0.0, %v2351
  %v2353 = vpop.f32.mrf.mxu0
  %v2354 = vadd.f32 0.0, %v2353
  %2355 = vdwg.mxu0
  %v2356 = vadd.f32 %v2192, %v2317
  %v2357 = vadd.f32 %v2193, %v2319
  %v2358 = vadd.f32 %v2194, %v2322
  %v2359 = vadd.f32 %v2195, %v2324
  %v2360 = vadd.f32 %v2196, %v2327
  %v2361 = vadd.f32 %v2197, %v2329
  %v2362 = vadd.f32 %v2198, %v2332
  %v2363 = vadd.f32 %v2199, %v2334
  %v2364 = vadd.f32 %v2200, %v2337
  %v2365 = vadd.f32 %v2201, %v2339
  %v2366 = vadd.f32 %v2202, %v2342
  %v2367 = vadd.f32 %v2203, %v2344
  %v2368 = vadd.f32 %v2204, %v2347
  %v2369 = vadd.f32 %v2205, %v2349
  %v2370 = vadd.f32 %v2206, %v2352
  %v2371 = vadd.f32 %v2207, %v2354
  %v2374 = vrot.slane %v785, 5
  %v2375 = vrot.slane %v2374, 4
  %v2376 = vrot.slane %v786, 5
  %v2377 = vsel %vm1359, %v2375, %v2376
  %v2378 = vrot.slane %v805, 5
  %v2379 = vrot.slane %v2378, 4
  %v2380 = vrot.slane %v806, 5
  %v2381 = vsel %vm1359, %v2379, %v2380
  %s2382 = scalar_lea.vmem %s4, 512
  %v2383 = vld [vmem:[%s2382] sm:$0xf]
  %v2384 = vld [vmem:[%s2382 + $0x4] sm:$0xf]
  %v2385 = vld [vmem:[%s2382 + $0x8] sm:$0xf]
  %v2386 = vld [vmem:[%s2382 + $0xc] sm:$0xf]
  %v2387 = vld [vmem:[%s2382 + $0x10] sm:$0xf]
  %v2388 = vld [vmem:[%s2382 + $0x14] sm:$0xf]
  %v2389 = vld [vmem:[%s2382 + $0x18] sm:$0xf]
  %v2390 = vld [vmem:[%s2382 + $0x1c] sm:$0xf]
  %v2391 = vld [vmem:[%s2382 + $0x20] sm:$0xf]
  %v2392 = vld [vmem:[%s2382 + $0x24] sm:$0xf]
  %v2393 = vld [vmem:[%s2382 + $0x28] sm:$0xf]
  %v2394 = vld [vmem:[%s2382 + $0x2c] sm:$0xf]
  %v2395 = vld [vmem:[%s2382 + $0x30] sm:$0xf]
  %v2396 = vld [vmem:[%s2382 + $0x34] sm:$0xf]
  %v2397 = vld [vmem:[%s2382 + $0x38] sm:$0xf]
  %v2398 = vld [vmem:[%s2382 + $0x3c] sm:$0xf]
  %v2399 = vunpack.c.l.b16 %v2377
  %v2400 = vunpack.c.l.b16 %v2381
  %v2401 = vpack.c.b16 %v2399, %v1939
  %v2402 = vpack.c.b16 %v2400, %v1940
  %v2421 = vunpack.c.l.b16 %v2383
  %v2422 = vunpack.c.l.b16 %v2384
  %v2423 = vunpack.c.l.b16 %v2385
  %v2424 = vunpack.c.l.b16 %v2386
  %v2425 = vunpack.c.l.b16 %v2387
  %v2426 = vunpack.c.l.b16 %v2388
  %v2427 = vunpack.c.l.b16 %v2389
  %v2428 = vunpack.c.l.b16 %v2390
  %v2429 = vunpack.c.l.b16 %v2391
  %v2430 = vunpack.c.l.b16 %v2392
  %v2431 = vunpack.c.l.b16 %v2393
  %v2432 = vunpack.c.l.b16 %v2394
  %v2433 = vunpack.c.l.b16 %v2395
  %v2434 = vunpack.c.l.b16 %v2396
  %v2435 = vunpack.c.l.b16 %v2397
  %v2436 = vunpack.c.l.b16 %v2398
  %v2437 = vpack.c.b16 %v2422, %v2421
  %v2438 = vpack.c.b16 %v2424, %v2423
  %v2439 = vpack.c.b16 %v2426, %v2425
  %v2440 = vpack.c.b16 %v2428, %v2427
  %v2441 = vpack.c.b16 %v2430, %v2429
  %v2442 = vpack.c.b16 %v2432, %v2431
  %v2443 = vpack.c.b16 %v2434, %v2433
  %v2444 = vpack.c.b16 %v2436, %v2435
  %2453 = vmatpush.bf16.msra.mxu0 %v2444
  %2454 = vmatpush.bf16.msra.mxu0 %v2443
  %2455 = vmatpush.bf16.msra.mxu0 %v2442
  %2456 = vmatpush.bf16.msra.mxu0 %v2441
  %2457 = vmatpush.bf16.msra.mxu0 %v2440
  %2458 = vmatpush.bf16.msra.mxu0 %v2439
  %2459 = vmatpush.bf16.msra.mxu0 %v2438
  %2460 = vmatpush.bf16.msra.mxu0 %v2437
  %2461 = vmatmul.bf16.gmra.mxu0 %v1458
  %v2462 = vpop.f32.mrf.mxu0
  %v2463 = vadd.f32 0.0, %v2462
  %v2464 = vpop.f32.mrf.mxu0
  %v2465 = vadd.f32 0.0, %v2464
  %2466 = vmatmul.bf16.gmra.mxu0 %v1459
  %v2467 = vpop.f32.mrf.mxu0
  %v2468 = vadd.f32 0.0, %v2467
  %v2469 = vpop.f32.mrf.mxu0
  %v2470 = vadd.f32 0.0, %v2469
  %2471 = vmatmul.bf16.gmra.mxu0 %v1460
  %v2472 = vpop.f32.mrf.mxu0
  %v2473 = vadd.f32 0.0, %v2472
  %v2474 = vpop.f32.mrf.mxu0
  %v2475 = vadd.f32 0.0, %v2474
  %2476 = vmatmul.bf16.gmra.mxu0 %v2401
  %v2477 = vpop.f32.mrf.mxu0
  %v2478 = vadd.f32 0.0, %v2477
  %v2479 = vpop.f32.mrf.mxu0
  %v2480 = vadd.f32 0.0, %v2479
  %2481 = vmatmul.bf16.gmra.mxu0 %v1462
  %v2482 = vpop.f32.mrf.mxu0
  %v2483 = vadd.f32 0.0, %v2482
  %v2484 = vpop.f32.mrf.mxu0
  %v2485 = vadd.f32 0.0, %v2484
  %2486 = vmatmul.bf16.gmra.mxu0 %v1463
  %v2487 = vpop.f32.mrf.mxu0
  %v2488 = vadd.f32 0.0, %v2487
  %v2489 = vpop.f32.mrf.mxu0
  %v2490 = vadd.f32 0.0, %v2489
  %2491 = vmatmul.bf16.gmra.mxu0 %v1464
  %v2492 = vpop.f32.mrf.mxu0
  %v2493 = vadd.f32 0.0, %v2492
  %v2494 = vpop.f32.mrf.mxu0
  %v2495 = vadd.f32 0.0, %v2494
  %2496 = vmatmul.bf16.gmra.mxu0 %v2402
  %v2497 = vpop.f32.mrf.mxu0
  %v2498 = vadd.f32 0.0, %v2497
  %v2499 = vpop.f32.mrf.mxu0
  %v2500 = vadd.f32 0.0, %v2499
  %2501 = vdwg.mxu0
  %v2502 = vadd.f32 %v2356, %v2463
  %v2503 = vadd.f32 %v2357, %v2465
  %v2504 = vadd.f32 %v2358, %v2468
  %v2505 = vadd.f32 %v2359, %v2470
  %v2506 = vadd.f32 %v2360, %v2473
  %v2507 = vadd.f32 %v2361, %v2475
  %v2508 = vadd.f32 %v2362, %v2478
  %v2509 = vadd.f32 %v2363, %v2480
  %v2510 = vadd.f32 %v2364, %v2483
  %v2511 = vadd.f32 %v2365, %v2485
  %v2512 = vadd.f32 %v2366, %v2488
  %v2513 = vadd.f32 %v2367, %v2490
  %v2514 = vadd.f32 %v2368, %v2493
  %v2515 = vadd.f32 %v2369, %v2495
  %v2516 = vadd.f32 %v2370, %v2498
  %v2517 = vadd.f32 %v2371, %v2500
  %v2518 = vadd.f32 %v2502, %v2503
  %v2519 = vadd.f32 %v2518, %v2504
  %v2520 = vadd.f32 %v2519, %v2505
  %v2521 = vadd.f32 %v2520, %v2506
  %v2522 = vadd.f32 %v2521, %v2507
  %v2523 = vadd.f32 %v2522, %v2508
  %v2524 = vadd.f32 %v2523, %v2509
  %v2525 = vadd.f32 %v2524, %v2510
  %v2526 = vadd.f32 %v2525, %v2511
  %v2527 = vadd.f32 %v2526, %v2512
  %v2528 = vadd.f32 %v2527, %v2513
  %v2529 = vadd.f32 %v2528, %v2514
  %v2530 = vadd.f32 %v2529, %v2515
  %v2531 = vadd.f32 %v2530, %v2516
  %v2532 = vadd.f32 %v2531, %v2517
  %v2533 = vrot.slane %v2532, 4
  %v2534 = vadd.f32 %v2532, %v2533
  %v2535 = vrot.slane %v2534, 2
  %v2536 = vadd.f32 %v2534, %v2535
  %v2537 = vrot.slane %v2536, 1
  %v2538 = vadd.f32 %v2536, %v2537
  %v2539 = vmul.f32 %v2538, 0.0078125
  %v2540 = vsub.f32 %v2502, %v2539
  %v2541 = vsub.f32 %v2503, %v2539
  %v2542 = vsub.f32 %v2504, %v2539
  %v2543 = vsub.f32 %v2505, %v2539
  %v2544 = vsub.f32 %v2506, %v2539
  %v2545 = vsub.f32 %v2507, %v2539
  %v2546 = vsub.f32 %v2508, %v2539
  %v2547 = vsub.f32 %v2509, %v2539
  %v2548 = vsub.f32 %v2510, %v2539
  %v2549 = vsub.f32 %v2511, %v2539
  %v2550 = vsub.f32 %v2512, %v2539
  %v2551 = vsub.f32 %v2513, %v2539
  %v2552 = vsub.f32 %v2514, %v2539
  %v2553 = vsub.f32 %v2515, %v2539
  %v2554 = vsub.f32 %v2516, %v2539
  %v2555 = vsub.f32 %v2517, %v2539
  %v2556 = vmul.f32 %v2540, %v2540
  %v2557 = vmul.f32 %v2541, %v2541
  %v2558 = vmul.f32 %v2542, %v2542
  %v2559 = vmul.f32 %v2543, %v2543
  %v2560 = vmul.f32 %v2544, %v2544
  %v2561 = vmul.f32 %v2545, %v2545
  %v2562 = vmul.f32 %v2546, %v2546
  %v2563 = vmul.f32 %v2547, %v2547
  %v2564 = vmul.f32 %v2548, %v2548
  %v2565 = vmul.f32 %v2549, %v2549
  %v2566 = vmul.f32 %v2550, %v2550
  %v2567 = vmul.f32 %v2551, %v2551
  %v2568 = vmul.f32 %v2552, %v2552
  %v2569 = vmul.f32 %v2553, %v2553
  %v2570 = vmul.f32 %v2554, %v2554
  %v2571 = vmul.f32 %v2555, %v2555
  %v2572 = vadd.f32 %v2556, %v2557
  %v2573 = vadd.f32 %v2572, %v2558
  %v2574 = vadd.f32 %v2573, %v2559
  %v2575 = vadd.f32 %v2574, %v2560
  %v2576 = vadd.f32 %v2575, %v2561
  %v2577 = vadd.f32 %v2576, %v2562
  %v2578 = vadd.f32 %v2577, %v2563
  %v2579 = vadd.f32 %v2578, %v2564
  %v2580 = vadd.f32 %v2579, %v2565
  %v2581 = vadd.f32 %v2580, %v2566
  %v2582 = vadd.f32 %v2581, %v2567
  %v2583 = vadd.f32 %v2582, %v2568
  %v2584 = vadd.f32 %v2583, %v2569
  %v2585 = vadd.f32 %v2584, %v2570
  %v2586 = vadd.f32 %v2585, %v2571
  %v2587 = vrot.slane %v2586, 4
  %v2588 = vadd.f32 %v2586, %v2587
  %v2589 = vrot.slane %v2588, 2
  %v2590 = vadd.f32 %v2588, %v2589
  %v2591 = vrot.slane %v2590, 1
  %v2592 = vadd.f32 %v2590, %v2591
  %v2593 = vmul.f32 %v2592, 0.0078125
  %v2594 = vld [vmem:[%s5] sm:$0x1]
  %v2595 = vadd.f32 %v2593, 1e-05
  %v2596 = vrsqrt.pop %v2595
  %v2597 = vmul.f32 %v2596, %v2595
  %v2598 = vmul.f32 %v2597, %v2596
  %v2599 = vmul.f32 0.5, %v2598
  %v2600 = vsub.f32 1.5, %v2599
  %v2601 = vmul.f32 %v2596, %v2600
  %vm2602 = vweird.f32 %v2595
  %vm2603 = vweird.f32 %v2596
  %vm2604 = vmor %vm2602, %vm2603
  %v2605 = vsel %vm2604, %v2596, %v2601
  %v2606 = vmul.f32 %v2594, %v2605
  %v2607 = vld [vmem:[%s6] sm:$0x1]
  %v2608 = vmul.f32 %v2539, %v2606
  %v2609 = vsub.f32 %v2607, %v2608
  %v2611 = vperm.slane %v2606, 0
  %v2613 = vmul.f32 %v2502, %v2611
  %v2614 = vmul.f32 %v2503, %v2611
  %v2615 = vmul.f32 %v2504, %v2611
  %v2616 = vmul.f32 %v2505, %v2611
  %v2617 = vmul.f32 %v2506, %v2611
  %v2618 = vmul.f32 %v2507, %v2611
  %v2619 = vmul.f32 %v2508, %v2611
  %v2620 = vmul.f32 %v2509, %v2611
  %v2621 = vmul.f32 %v2510, %v2611
  %v2622 = vmul.f32 %v2511, %v2611
  %v2623 = vmul.f32 %v2512, %v2611
  %v2624 = vmul.f32 %v2513, %v2611
  %v2625 = vmul.f32 %v2514, %v2611
  %v2626 = vmul.f32 %v2515, %v2611
  %v2627 = vmul.f32 %v2516, %v2611
  %v2628 = vmul.f32 %v2517, %v2611
  %v2630 = vperm.slane %v2609, 0
  %v2632 = vadd.f32 %v2613, %v2630
  %v2633 = vadd.f32 %v2614, %v2630
  %v2634 = vadd.f32 %v2615, %v2630
  %v2635 = vadd.f32 %v2616, %v2630
  %v2636 = vadd.f32 %v2617, %v2630
  %v2637 = vadd.f32 %v2618, %v2630
  %v2638 = vadd.f32 %v2619, %v2630
  %v2639 = vadd.f32 %v2620, %v2630
  %v2640 = vadd.f32 %v2621, %v2630
  %v2641 = vadd.f32 %v2622, %v2630
  %v2642 = vadd.f32 %v2623, %v2630
  %v2643 = vadd.f32 %v2624, %v2630
  %v2644 = vadd.f32 %v2625, %v2630
  %v2645 = vadd.f32 %v2626, %v2630
  %v2646 = vadd.f32 %v2627, %v2630
  %v2647 = vadd.f32 %v2628, %v2630
  %v2648 = vmax.f32 %v2632, 0.0
  %v2649 = vmax.f32 %v2633, 0.0
  %v2650 = vmax.f32 %v2634, 0.0
  %v2651 = vmax.f32 %v2635, 0.0
  %v2652 = vmax.f32 %v2636, 0.0
  %v2653 = vmax.f32 %v2637, 0.0
  %v2654 = vmax.f32 %v2638, 0.0
  %v2655 = vmax.f32 %v2639, 0.0
  %v2656 = vmax.f32 %v2640, 0.0
  %v2657 = vmax.f32 %v2641, 0.0
  %v2658 = vmax.f32 %v2642, 0.0
  %v2659 = vmax.f32 %v2643, 0.0
  %v2660 = vmax.f32 %v2644, 0.0
  %v2661 = vmax.f32 %v2645, 0.0
  %v2662 = vmax.f32 %v2646, 0.0
  %v2663 = vmax.f32 %v2647, 0.0
  %v2664 = vpack.c.bf16 %v2648, %v2648
  %v2665 = vpack.c.bf16 %v2649, %v2649
  %v2666 = vpack.c.bf16 %v2650, %v2650
  %v2667 = vpack.c.bf16 %v2651, %v2651
  %v2668 = vpack.c.bf16 %v2652, %v2652
  %v2669 = vpack.c.bf16 %v2653, %v2653
  %v2670 = vpack.c.bf16 %v2654, %v2654
  %v2671 = vpack.c.bf16 %v2655, %v2655
  %v2672 = vpack.c.bf16 %v2656, %v2656
  %v2673 = vpack.c.bf16 %v2657, %v2657
  %v2674 = vpack.c.bf16 %v2658, %v2658
  %v2675 = vpack.c.bf16 %v2659, %v2659
  %v2676 = vpack.c.bf16 %v2660, %v2660
  %v2677 = vpack.c.bf16 %v2661, %v2661
  %v2678 = vpack.c.bf16 %v2662, %v2662
  %v2679 = vpack.c.bf16 %v2663, %v2663
  %2680 = vst [vmem:[%s7] sm:$0xf] %v2664
  %2681 = vst [vmem:[%s7 + $0x4] sm:$0xf] %v2665
  %2682 = vst [vmem:[%s7 + $0x8] sm:$0xf] %v2666
  %2683 = vst [vmem:[%s7 + $0xc] sm:$0xf] %v2667
  %2684 = vst [vmem:[%s7 + $0x10] sm:$0xf] %v2668
  %2685 = vst [vmem:[%s7 + $0x14] sm:$0xf] %v2669
  %2686 = vst [vmem:[%s7 + $0x18] sm:$0xf] %v2670
  %2687 = vst [vmem:[%s7 + $0x1c] sm:$0xf] %v2671
  %2688 = vst [vmem:[%s7 + $0x20] sm:$0xf] %v2672
  %2689 = vst [vmem:[%s7 + $0x24] sm:$0xf] %v2673
  %2690 = vst [vmem:[%s7 + $0x28] sm:$0xf] %v2674
  %2691 = vst [vmem:[%s7 + $0x2c] sm:$0xf] %v2675
  %2692 = vst [vmem:[%s7 + $0x30] sm:$0xf] %v2676
  %2693 = vst [vmem:[%s7 + $0x34] sm:$0xf] %v2677
  %2694 = vst [vmem:[%s7 + $0x38] sm:$0xf] %v2678
  %2695 = vst [vmem:[%s7 + $0x3c] sm:$0xf] %v2679
  // Predicated region
  $region34: #{down_forward.1} parent=0 // pred_check
    _
  $region35: #{down_forward.1} parent=0 // pred_check_branch
    %2697 = sbr.rel (0) target = $region37
  $region36: #{down_forward.1} parent=0 // pred_region
    _
  $region37: #{down_forward.1} parent=0 // pred_fallthru
    _
  // Predicated region
  $region38: #{down_forward.1} parent=0 // pred_check
    _
  $region39: #{down_forward.1} parent=0 // pred_check_branch
    %2699 = sbr.rel (0) target = $region41
  $region40: #{down_forward.1} parent=0 // pred_region
    _
  $region41: #{down_forward.1} parent=0 // pred_fallthru
    _

</llo_original>
